<compile_context>
chip_gen: v5e
topology: v5e:2x2
jax: 0.10.0
libtpu: 0.0.40
codegen_flags: <defaults>
</compile_context>

<pallas_src>
import functools

import jax
import jax.numpy as jnp
from jax import lax
from jax.experimental import pallas as pl
from jax.experimental.pallas import tpu as pltpu

NEG_SLOPE = 0.01        # torch.nn.LeakyReLU default
LANES = 128             # slab lane width (TPU lane dimension)
BLOCK_ALIGN = 16        # sublane alignment of slab blocks (bf16-tile friendly)


def _leaky_relu(x):
    return jnp.where(x > 0, x, NEG_SLOPE * x)


def _round_up(x, m):
    return ((x + m - 1) // m) * m


# ---------------------------------------------------------------------------
# Fused forward kernel (single invocation, everything resident in VMEM/vregs)
# ---------------------------------------------------------------------------
def fused_embedding_kernel(batch_ref, x_ref, slab_ref, o_ref, *,
                           offs, n_graphs, mm_dtype):
    f32 = jnp.float32

    def wblk(name):
        # weight block: (rows, 128); columns beyond the real width are zero
        s, r, _ = offs[name]
        return slab_ref[s:s + r, :]

    def wrow(name):
        # single row (biases, counts-row of glob W1) as (1, 128) f32
        s, _, _ = offs[name]
        return slab_ref[s:s + 1, :].astype(f32)

    def mxdot(a, b):
        # MXU dot: operands cast to mm_dtype (f32 or bf16), f32 accumulation
        return jnp.dot(a.astype(mm_dtype), b.astype(mm_dtype),
                       preferred_element_type=f32)

    x = x_ref[...].astype(f32)           # (N, n_in)
    bid = batch_ref[...]                 # (N, 1) int32
    N = x.shape[0]
    B = n_graphs

    hid_in, n_out = offs["in_w1"][2], offs["in_w2"][2]
    hid_em, L = offs["em_w1"][2], offs["em_w2"][2]
    hid_gl, G = offs["gl_w1m"][2], offs["gl_w2"][2]
    hid_ou = offs["ou_w1e"][2]

    # ---- inemb (final_linear) ----
    t = _leaky_relu(mxdot(x, wblk("in_w1")) + wrow("in_b1"))
    h = (mxdot(t[:, :hid_in], wblk("in_w2")) + wrow("in_b2"))[:, :n_out]     # (N, n_out)

    # ---- cnu.emb ----
    t = _leaky_relu(mxdot(h, wblk("em_w1")) + wrow("em_b1"))
    e = _leaky_relu(mxdot(t[:, :hid_em], wblk("em_w2")) + wrow("em_b2"))[:, :L]  # (N, L)

    # ---- global_mad_pool: per-graph counts / mean / mean-abs-dev / max ----
    oh = (bid == lax.broadcasted_iota(jnp.int32, (N, B), 1)).astype(f32)     # (N, B)
    ohT = oh.T                                                               # (B, N)
    counts = jnp.sum(ohT, axis=1, keepdims=True)                             # (B, 1)
    inv = 1.0 / jnp.maximum(counts, 1.0)      # exact divide; clamp guards empty graphs
    means = mxdot(ohT, e) * inv                                              # (B, L)
    mads = mxdot(ohT, jnp.abs(e - mxdot(oh, means))) * inv                   # (B, L)
    masked = jnp.where(ohT[:, :, None] > 0.5, e[None, :, :], f32(-1e30))     # (B, N, L)
    maxs = jnp.max(masked, axis=1)                                           # (B, L)

    # ---- cnu.glob on hstack([counts, means, mads, maxs]) without the concat:
    #      first-layer weight split per stat block (mathematically identical) ----
    pre = (counts * wrow("gl_w1c")
           + mxdot(means, wblk("gl_w1m"))
           + mxdot(mads, wblk("gl_w1d"))
           + mxdot(maxs, wblk("gl_w1x"))
           + wrow("gl_b1"))
    t = _leaky_relu(pre)
    g = _leaky_relu(mxdot(t[:, :hid_gl], wblk("gl_w2")) + wrow("gl_b2"))[:, :G]  # (B, G)

    # ---- cnu.out on concat([e, g[batch]]): gather g per node via one-hot
    #      matmul; first-layer weight split into the e / g halves ----
    g_per_node = mxdot(oh, g)                                                # (N, G)
    t = _leaky_relu(mxdot(e, wblk("ou_w1e"))
                    + mxdot(g_per_node, wblk("ou_w1g"))
                    + wrow("ou_b1"))
    y = mxdot(t[:, :hid_ou], wblk("ou_w2")) + wrow("ou_b2")                  # (N, 128)

    # residual + direct (N, n_out) store (no padded HBM writeback)
    o_ref[...] = (y[:, :n_out] + h).astype(o_ref.dtype)


# ---------------------------------------------------------------------------
# One-time parameter prep: pack everything into a single lane-dense slab
# ---------------------------------------------------------------------------
def prepare_params(params, n_graphs, matmul_dtype=jnp.float32):
    """Done once at init: the steady-state forward has zero per-call parameter
    glue and exactly one parameter DMA (the packed slab)."""
    blocks, offs = [], {}
    cur = 0

    def add(name, a):
        nonlocal cur
        a = jnp.asarray(a, jnp.float32)
        r, c = a.shape
        rp = _round_up(r, BLOCK_ALIGN)
        blocks.append(jnp.zeros((rp, LANES), jnp.float32).at[:r, :c].set(a))
        offs[name] = (cur, r, c)          # (start row, real rows, real cols)
        cur += rp

    inp, emp = params["inemb"], params["cnu_emb"]
    glp, oup = params["cnu_glob"], params["cnu_out"]
    L = emp["w2"].shape[1]

    add("in_w1", inp["w1"]); add("in_b1", inp["b1"])
    add("in_w2", inp["w2"]); add("in_b2", inp["b2"])
    add("em_w1", emp["w1"]); add("em_b1", emp["b1"])
    add("em_w2", emp["w2"]); add("em_b2", emp["b2"])
    # cnu.glob first-layer weight split by pooled stat (counts | mean | mad | max)
    add("gl_w1c", glp["w1"][0:1]);             add("gl_w1m", glp["w1"][1:1 + L])
    add("gl_w1d", glp["w1"][1 + L:1 + 2 * L]); add("gl_w1x", glp["w1"][1 + 2 * L:1 + 3 * L])
    add("gl_b1", glp["b1"]); add("gl_w2", glp["w2"]); add("gl_b2", glp["b2"])
    # cnu.out first-layer weight split into e / g halves
    add("ou_w1e", oup["w1"][:L]); add("ou_w1g", oup["w1"][L:])
    add("ou_b1", oup["b1"]); add("ou_w2", oup["w2"]); add("ou_b2", oup["b2"])

    slab = jnp.concatenate(blocks, axis=0).astype(matmul_dtype)
    dims = {"n_out": int(inp["w2"].shape[1]), "n_graphs": int(n_graphs)}
    return {"slab": slab, "offs": offs, "dims": dims, "matmul_dtype": matmul_dtype}


# ---------------------------------------------------------------------------
# Forward wrapper: the only per-call glue left is the (N, 1) batch reshape
# ---------------------------------------------------------------------------
def embedding_forward(prepped, x, batch):
    N = x.shape[0]
    dims = prepped["dims"]
    batch_col = batch.astype(jnp.int32).reshape(N, 1)
    kernel = functools.partial(
        fused_embedding_kernel,
        offs=prepped["offs"],
        n_graphs=dims["n_graphs"],
        mm_dtype=prepped["matmul_dtype"],
    )
    vmem = pl.BlockSpec(memory_space=pltpu.MemorySpace.VMEM)
    # No grid: one invocation, single-buffered whole-array VMEM blocks.
    return pl.pallas_call(
        kernel,
        out_shape=jax.ShapeDtypeStruct((N, dims["n_out"]), x.dtype),
        in_specs=[vmem, vmem, vmem],
        out_specs=vmem,
    )(batch_col, x, prepped["slab"])


# ---------------------------------------------------------------------------
# Parameter init (deterministic, PyTorch-Linear-like uniform fan-in scaling)
# ---------------------------------------------------------------------------
def init_ffn(key, n_in, n_out, hidden):
    k1, k2, k3, k4 = jax.random.split(key, 4)
    lim1 = 1.0 / jnp.sqrt(n_in)
    lim2 = 1.0 / jnp.sqrt(hidden)
    return {
        "w1": jax.random.uniform(k1, (n_in, hidden), jnp.float32, -lim1, lim1),
        "b1": jax.random.uniform(k2, (1, hidden), jnp.float32, -lim1, lim1),
        "w2": jax.random.uniform(k3, (hidden, n_out), jnp.float32, -lim2, lim2),
        "b2": jax.random.uniform(k4, (1, n_out), jnp.float32, -lim2, lim2),
    }


# ---------------------------------------------------------------------------
# Pure-JAX reference
# ---------------------------------------------------------------------------
def _ffn_ref(x, p, final_linear):
    h = _leaky_relu(x @ p["w1"] + p["b1"])
    y = h @ p["w2"] + p["b2"]
    return y if final_linear else _leaky_relu(y)


def embedding_ref(params, x, batch, n_graphs):
    h = _ffn_ref(x, params["inemb"], True)
    e = _ffn_ref(h, params["cnu_emb"], False)
    oh = (batch[:, None] == jnp.arange(n_graphs)[None, :]).astype(jnp.float32)
    counts = oh.sum(0)[:, None]
    means = (oh.T @ e) / counts
    mads = (oh.T @ jnp.abs(e - means[batch])) / counts
    maxs = jnp.max(jnp.where(oh.T[:, :, None] > 0.5, e[None], -1e30), axis=1)
    x_glob = jnp.concatenate([counts, means, mads, maxs], axis=-1)
    g = _ffn_ref(x_glob, params["cnu_glob"], False)
    cat = jnp.concatenate([e, g[batch]], axis=-1)
    return _ffn_ref(cat, params["cnu_out"], True) + h


if __name__ == "__main__":
    key = jax.random.PRNGKey(0)
    n_ftx_in, n_ftx_out, n_ftx_latent, hidden = 3, 16, 8, 32
    N, B = 64, 4  # 64 nodes, 4 graphs (16 nodes each)

    ks = jax.random.split(key, 5)
    params = {
        "inemb":    init_ffn(ks[0], n_ftx_in, n_ftx_out, hidden),
        "cnu_emb":  init_ffn(ks[1], n_ftx_out, n_ftx_latent, hidden),
        "cnu_glob": init_ffn(ks[2], 1 + 3 * n_ftx_latent, n_ftx_latent, hidden),
        "cnu_out":  init_ffn(ks[3], n_ftx_latent + n_ftx_latent, n_ftx_out, hidden),
    }
    x = jax.random.normal(ks[4], (N, n_ftx_in), jnp.float32)
    batch = jnp.repeat(jnp.arange(B, dtype=jnp.int32), N // B)

    ref = embedding_ref(params, x, batch, B)

    # f32 MXU-operand path (default); exact pool divides -> tight tolerance.
    prepped = prepare_params(params, n_graphs=B)
    out = embedding_forward(prepped, x, batch)
    jax.block_until_ready(out)
    assert out.shape == (N, n_ftx_out)
    assert jnp.allclose(out, ref, atol=5e-4, rtol=5e-4), "f32 kernel mismatch vs reference"

    # bf16 MXU-operand path (v6e/v7x lever: fewer MXU passes, half the weight
    # DMA bytes). Tolerance covers bf16 operand rounding through the chained dots.
    prepped_bf16 = prepare_params(params, n_graphs=B, matmul_dtype=jnp.bfloat16)
    out_bf16 = embedding_forward(prepped_bf16, x, batch)
    jax.block_until_ready(out_bf16)
    assert jnp.allclose(out_bf16, ref, atol=8e-2, rtol=8e-2), "bf16 kernel mismatch vs reference"

    print("KERNEL_OK")
</pallas_src>

<mosaic_0001>
module attributes {stable_mosaic.version = 11 : i64} {
  func.func @fused_embedding_kernel(%arg0: memref<64x1xi32, #tpu.memory_space<vmem>>, %arg1: memref<64x3xf32, #tpu.memory_space<vmem>>, %arg2: memref<384x128xf32, #tpu.memory_space<vmem>>, %arg3: memref<64x16xf32, #tpu.memory_space<vmem>>) attributes {dimension_semantics = [], scalar_prefetch = 0 : i64, scratch_operands = 0 : i64, tpu.core_type = #tpu.core_type<tc>} {
    %c0 = arith.constant 0 : index
    %c0_0 = arith.constant 0 : index
    %0 = vector.load %arg1[%c0, %c0_0] : memref<64x3xf32, #tpu.memory_space<vmem>>, vector<64x3xf32>
    %c0_1 = arith.constant 0 : index
    %c0_2 = arith.constant 0 : index
    %1 = vector.load %arg0[%c0_1, %c0_2] : memref<64x1xi32, #tpu.memory_space<vmem>>, vector<64x1xi32>
    %c0_3 = arith.constant 0 : index
    %c0_4 = arith.constant 0 : index
    %2 = vector.load %arg2[%c0_3, %c0_4] : memref<384x128xf32, #tpu.memory_space<vmem>>, vector<3x128xf32>
    %cst = arith.constant dense<0.000000e+00> : vector<64x128xf32>
    %3 = tpu.matmul %0, %2, %cst {dimension_numbers = #tpu.dot_dimension_numbers<[1], [0], [0], [1], [0, 0, 1, 1], [], []>} : vector<64x3xf32>, vector<3x128xf32>, vector<64x128xf32> -> vector<64x128xf32>
    %c16 = arith.constant 16 : index
    %c0_5 = arith.constant 0 : index
    %4 = vector.load %arg2[%c16, %c0_5] : memref<384x128xf32, #tpu.memory_space<vmem>>, vector<1x128xf32>
    %5 = vector.broadcast %4 : vector<1x128xf32> to vector<64x128xf32>
    %6 = arith.addf %3, %5 : vector<64x128xf32>
    %cst_6 = arith.constant 0.000000e+00 : f32
    %7 = vector.broadcast %cst_6 : f32 to vector<64x128xf32>
    %8 = arith.cmpf ogt, %6, %7 : vector<64x128xf32>
    %cst_7 = arith.constant 0.00999999977 : f32
    %9 = vector.broadcast %cst_7 : f32 to vector<64x128xf32>
    %10 = arith.mulf %9, %6 : vector<64x128xf32>
    %11 = arith.select %8, %6, %10 : vector<64x128xi1>, vector<64x128xf32>
    %12 = vector.extract_strided_slice %11 {offsets = [0, 0], sizes = [64, 32], strides = [1, 1]} : vector<64x128xf32> to vector<64x32xf32>
    %c32 = arith.constant 32 : index
    %c0_8 = arith.constant 0 : index
    %13 = vector.load %arg2[%c32, %c0_8] : memref<384x128xf32, #tpu.memory_space<vmem>>, vector<32x128xf32>
    %cst_9 = arith.constant dense<0.000000e+00> : vector<64x128xf32>
    %14 = tpu.matmul %12, %13, %cst_9 {dimension_numbers = #tpu.dot_dimension_numbers<[1], [0], [0], [1], [0, 0, 1, 1], [], []>} : vector<64x32xf32>, vector<32x128xf32>, vector<64x128xf32> -> vector<64x128xf32>
    %c64 = arith.constant 64 : index
    %c0_10 = arith.constant 0 : index
    %15 = vector.load %arg2[%c64, %c0_10] : memref<384x128xf32, #tpu.memory_space<vmem>>, vector<1x128xf32>
    %16 = vector.broadcast %15 : vector<1x128xf32> to vector<64x128xf32>
    %17 = arith.addf %14, %16 : vector<64x128xf32>
    %18 = vector.extract_strided_slice %17 {offsets = [0, 0], sizes = [64, 16], strides = [1, 1]} : vector<64x128xf32> to vector<64x16xf32>
    %c80 = arith.constant 80 : index
    %c0_11 = arith.constant 0 : index
    %19 = vector.load %arg2[%c80, %c0_11] : memref<384x128xf32, #tpu.memory_space<vmem>>, vector<16x128xf32>
    %cst_12 = arith.constant dense<0.000000e+00> : vector<64x128xf32>
    %20 = tpu.matmul %18, %19, %cst_12 {dimension_numbers = #tpu.dot_dimension_numbers<[1], [0], [0], [1], [0, 0, 1, 1], [], []>} : vector<64x16xf32>, vector<16x128xf32>, vector<64x128xf32> -> vector<64x128xf32>
    %c96 = arith.constant 96 : index
    %c0_13 = arith.constant 0 : index
    %21 = vector.load %arg2[%c96, %c0_13] : memref<384x128xf32, #tpu.memory_space<vmem>>, vector<1x128xf32>
    %22 = vector.broadcast %21 : vector<1x128xf32> to vector<64x128xf32>
    %23 = arith.addf %20, %22 : vector<64x128xf32>
    %cst_14 = arith.constant 0.000000e+00 : f32
    %24 = vector.broadcast %cst_14 : f32 to vector<64x128xf32>
    %25 = arith.cmpf ogt, %23, %24 : vector<64x128xf32>
    %cst_15 = arith.constant 0.00999999977 : f32
    %26 = vector.broadcast %cst_15 : f32 to vector<64x128xf32>
    %27 = arith.mulf %26, %23 : vector<64x128xf32>
    %28 = arith.select %25, %23, %27 : vector<64x128xi1>, vector<64x128xf32>
    %29 = vector.extract_strided_slice %28 {offsets = [0, 0], sizes = [64, 32], strides = [1, 1]} : vector<64x128xf32> to vector<64x32xf32>
    %c112 = arith.constant 112 : index
    %c0_16 = arith.constant 0 : index
    %30 = vector.load %arg2[%c112, %c0_16] : memref<384x128xf32, #tpu.memory_space<vmem>>, vector<32x128xf32>
    %cst_17 = arith.constant dense<0.000000e+00> : vector<64x128xf32>
    %31 = tpu.matmul %29, %30, %cst_17 {dimension_numbers = #tpu.dot_dimension_numbers<[1], [0], [0], [1], [0, 0, 1, 1], [], []>} : vector<64x32xf32>, vector<32x128xf32>, vector<64x128xf32> -> vector<64x128xf32>
    %c144 = arith.constant 144 : index
    %c0_18 = arith.constant 0 : index
    %32 = vector.load %arg2[%c144, %c0_18] : memref<384x128xf32, #tpu.memory_space<vmem>>, vector<1x128xf32>
    %33 = vector.broadcast %32 : vector<1x128xf32> to vector<64x128xf32>
    %34 = arith.addf %31, %33 : vector<64x128xf32>
    %cst_19 = arith.constant 0.000000e+00 : f32
    %35 = vector.broadcast %cst_19 : f32 to vector<64x128xf32>
    %36 = arith.cmpf ogt, %34, %35 : vector<64x128xf32>
    %cst_20 = arith.constant 0.00999999977 : f32
    %37 = vector.broadcast %cst_20 : f32 to vector<64x128xf32>
    %38 = arith.mulf %37, %34 : vector<64x128xf32>
    %39 = arith.select %36, %34, %38 : vector<64x128xi1>, vector<64x128xf32>
    %40 = vector.extract_strided_slice %39 {offsets = [0, 0], sizes = [64, 8], strides = [1, 1]} : vector<64x128xf32> to vector<64x8xf32>
    %41 = tpu.iota {dimensions = array<i32: 1>} : vector<64x4xi32>
    %42 = vector.broadcast %1 : vector<64x1xi32> to vector<64x4xi32>
    %43 = arith.cmpi eq, %42, %41 : vector<64x4xi32>
    %44 = arith.extui %43 : vector<64x4xi1> to vector<64x4xi32>
    %45 = arith.sitofp %44 : vector<64x4xi32> to vector<64x4xf32>
    %46 = tpu.transpose %45, [1, 0] : vector<64x4xf32> -> vector<4x64xf32>
    %cst_21 = arith.constant dense<0.000000e+00> : vector<4xf32>
    %47 = vector.multi_reduction <add>, %46, %cst_21 [1] : vector<4x64xf32> to vector<4xf32>
    %48 = vector.shape_cast %47 : vector<4xf32> to vector<4x1xf32>
    %cst_22 = arith.constant 1.000000e+00 : f32
    %49 = vector.broadcast %cst_22 : f32 to vector<4x1xf32>
    %50 = arith.maximumf %48, %49 : vector<4x1xf32>
    %cst_23 = arith.constant 1.000000e+00 : f32
    %51 = vector.broadcast %cst_23 : f32 to vector<4x1xf32>
    %52 = arith.divf %51, %50 : vector<4x1xf32>
    %cst_24 = arith.constant dense<0.000000e+00> : vector<4x8xf32>
    %53 = tpu.matmul %46, %40, %cst_24 {dimension_numbers = #tpu.dot_dimension_numbers<[1], [0], [0], [1], [0, 0, 1, 1], [], []>} : vector<4x64xf32>, vector<64x8xf32>, vector<4x8xf32> -> vector<4x8xf32>
    %54 = vector.broadcast %52 : vector<4x1xf32> to vector<4x8xf32>
    %55 = arith.mulf %53, %54 : vector<4x8xf32>
    %cst_25 = arith.constant dense<0.000000e+00> : vector<64x8xf32>
    %56 = tpu.matmul %45, %55, %cst_25 {dimension_numbers = #tpu.dot_dimension_numbers<[1], [0], [0], [1], [0, 0, 1, 1], [], []>} : vector<64x4xf32>, vector<4x8xf32>, vector<64x8xf32> -> vector<64x8xf32>
    %57 = arith.subf %40, %56 : vector<64x8xf32>
    %58 = math.absf %57 : vector<64x8xf32>
    %cst_26 = arith.constant dense<0.000000e+00> : vector<4x8xf32>
    %59 = tpu.matmul %46, %58, %cst_26 {dimension_numbers = #tpu.dot_dimension_numbers<[1], [0], [0], [1], [0, 0, 1, 1], [], []>} : vector<4x64xf32>, vector<64x8xf32>, vector<4x8xf32> -> vector<4x8xf32>
    %60 = vector.broadcast %52 : vector<4x1xf32> to vector<4x8xf32>
    %61 = arith.mulf %59, %60 : vector<4x8xf32>
    %62 = vector.shape_cast %46 : vector<4x64xf32> to vector<4x64x1xf32>
    %cst_27 = arith.constant 5.000000e-01 : f32
    %63 = vector.broadcast %cst_27 : f32 to vector<4x64x1xf32>
    %64 = arith.cmpf ogt, %62, %63 : vector<4x64x1xf32>
    %65 = vector.shape_cast %40 : vector<64x8xf32> to vector<1x64x8xf32>
    %cst_28 = arith.constant -1.000000e+30 : f32
    %66 = vector.shape_cast %64 : vector<4x64x1xi1> to vector<4x64x1xi1>
    %67 = vector.broadcast %66 : vector<4x64x1xi1> to vector<4x64x8xi1>
    %68 = vector.shape_cast %65 : vector<1x64x8xf32> to vector<1x64x8xf32>
    %69 = vector.broadcast %68 : vector<1x64x8xf32> to vector<4x64x8xf32>
    %70 = vector.broadcast %cst_28 : f32 to vector<4x64x8xf32>
    %71 = arith.select %67, %69, %70 : vector<4x64x8xi1>, vector<4x64x8xf32>
    %cst_29 = arith.constant dense<0xFF800000> : vector<4x8xf32>
    %72 = vector.multi_reduction <maximumf>, %71, %cst_29 [1] : vector<4x64x8xf32> to vector<4x8xf32>
    %c160 = arith.constant 160 : index
    %c0_30 = arith.constant 0 : index
    %73 = vector.load %arg2[%c160, %c0_30] : memref<384x128xf32, #tpu.memory_space<vmem>>, vector<1x128xf32>
    %74 = vector.broadcast %48 : vector<4x1xf32> to vector<4x128xf32>
    %75 = vector.broadcast %73 : vector<1x128xf32> to vector<4x128xf32>
    %76 = arith.mulf %74, %75 : vector<4x128xf32>
    %c176 = arith.constant 176 : index
    %c0_31 = arith.constant 0 : index
    %77 = vector.load %arg2[%c176, %c0_31] : memref<384x128xf32, #tpu.memory_space<vmem>>, vector<8x128xf32>
    %cst_32 = arith.constant dense<0.000000e+00> : vector<4x128xf32>
    %78 = tpu.matmul %55, %77, %cst_32 {dimension_numbers = #tpu.dot_dimension_numbers<[1], [0], [0], [1], [0, 0, 1, 1], [], []>} : vector<4x8xf32>, vector<8x128xf32>, vector<4x128xf32> -> vector<4x128xf32>
    %79 = arith.addf %76, %78 : vector<4x128xf32>
    %c192 = arith.constant 192 : index
    %c0_33 = arith.constant 0 : index
    %80 = vector.load %arg2[%c192, %c0_33] : memref<384x128xf32, #tpu.memory_space<vmem>>, vector<8x128xf32>
    %cst_34 = arith.constant dense<0.000000e+00> : vector<4x128xf32>
    %81 = tpu.matmul %61, %80, %cst_34 {dimension_numbers = #tpu.dot_dimension_numbers<[1], [0], [0], [1], [0, 0, 1, 1], [], []>} : vector<4x8xf32>, vector<8x128xf32>, vector<4x128xf32> -> vector<4x128xf32>
    %82 = arith.addf %79, %81 : vector<4x128xf32>
    %c208 = arith.constant 208 : index
    %c0_35 = arith.constant 0 : index
    %83 = vector.load %arg2[%c208, %c0_35] : memref<384x128xf32, #tpu.memory_space<vmem>>, vector<8x128xf32>
    %cst_36 = arith.constant dense<0.000000e+00> : vector<4x128xf32>
    %84 = tpu.matmul %72, %83, %cst_36 {dimension_numbers = #tpu.dot_dimension_numbers<[1], [0], [0], [1], [0, 0, 1, 1], [], []>} : vector<4x8xf32>, vector<8x128xf32>, vector<4x128xf32> -> vector<4x128xf32>
    %85 = arith.addf %82, %84 : vector<4x128xf32>
    %c224 = arith.constant 224 : index
    %c0_37 = arith.constant 0 : index
    %86 = vector.load %arg2[%c224, %c0_37] : memref<384x128xf32, #tpu.memory_space<vmem>>, vector<1x128xf32>
    %87 = vector.broadcast %86 : vector<1x128xf32> to vector<4x128xf32>
    %88 = arith.addf %85, %87 : vector<4x128xf32>
    %cst_38 = arith.constant 0.000000e+00 : f32
    %89 = vector.broadcast %cst_38 : f32 to vector<4x128xf32>
    %90 = arith.cmpf ogt, %88, %89 : vector<4x128xf32>
    %cst_39 = arith.constant 0.00999999977 : f32
    %91 = vector.broadcast %cst_39 : f32 to vector<4x128xf32>
    %92 = arith.mulf %91, %88 : vector<4x128xf32>
    %93 = arith.select %90, %88, %92 : vector<4x128xi1>, vector<4x128xf32>
    %94 = vector.extract_strided_slice %93 {offsets = [0, 0], sizes = [4, 32], strides = [1, 1]} : vector<4x128xf32> to vector<4x32xf32>
    %c240 = arith.constant 240 : index
    %c0_40 = arith.constant 0 : index
    %95 = vector.load %arg2[%c240, %c0_40] : memref<384x128xf32, #tpu.memory_space<vmem>>, vector<32x128xf32>
    %cst_41 = arith.constant dense<0.000000e+00> : vector<4x128xf32>
    %96 = tpu.matmul %94, %95, %cst_41 {dimension_numbers = #tpu.dot_dimension_numbers<[1], [0], [0], [1], [0, 0, 1, 1], [], []>} : vector<4x32xf32>, vector<32x128xf32>, vector<4x128xf32> -> vector<4x128xf32>
    %c272 = arith.constant 272 : index
    %c0_42 = arith.constant 0 : index
    %97 = vector.load %arg2[%c272, %c0_42] : memref<384x128xf32, #tpu.memory_space<vmem>>, vector<1x128xf32>
    %98 = vector.broadcast %97 : vector<1x128xf32> to vector<4x128xf32>
    %99 = arith.addf %96, %98 : vector<4x128xf32>
    %cst_43 = arith.constant 0.000000e+00 : f32
    %100 = vector.broadcast %cst_43 : f32 to vector<4x128xf32>
    %101 = arith.cmpf ogt, %99, %100 : vector<4x128xf32>
    %cst_44 = arith.constant 0.00999999977 : f32
    %102 = vector.broadcast %cst_44 : f32 to vector<4x128xf32>
    %103 = arith.mulf %102, %99 : vector<4x128xf32>
    %104 = arith.select %101, %99, %103 : vector<4x128xi1>, vector<4x128xf32>
    %105 = vector.extract_strided_slice %104 {offsets = [0, 0], sizes = [4, 8], strides = [1, 1]} : vector<4x128xf32> to vector<4x8xf32>
    %cst_45 = arith.constant dense<0.000000e+00> : vector<64x8xf32>
    %106 = tpu.matmul %45, %105, %cst_45 {dimension_numbers = #tpu.dot_dimension_numbers<[1], [0], [0], [1], [0, 0, 1, 1], [], []>} : vector<64x4xf32>, vector<4x8xf32>, vector<64x8xf32> -> vector<64x8xf32>
    %c288 = arith.constant 288 : index
    %c0_46 = arith.constant 0 : index
    %107 = vector.load %arg2[%c288, %c0_46] : memref<384x128xf32, #tpu.memory_space<vmem>>, vector<8x128xf32>
    %cst_47 = arith.constant dense<0.000000e+00> : vector<64x128xf32>
    %108 = tpu.matmul %40, %107, %cst_47 {dimension_numbers = #tpu.dot_dimension_numbers<[1], [0], [0], [1], [0, 0, 1, 1], [], []>} : vector<64x8xf32>, vector<8x128xf32>, vector<64x128xf32> -> vector<64x128xf32>
    %c304 = arith.constant 304 : index
    %c0_48 = arith.constant 0 : index
    %109 = vector.load %arg2[%c304, %c0_48] : memref<384x128xf32, #tpu.memory_space<vmem>>, vector<8x128xf32>
    %cst_49 = arith.constant dense<0.000000e+00> : vector<64x128xf32>
    %110 = tpu.matmul %106, %109, %cst_49 {dimension_numbers = #tpu.dot_dimension_numbers<[1], [0], [0], [1], [0, 0, 1, 1], [], []>} : vector<64x8xf32>, vector<8x128xf32>, vector<64x128xf32> -> vector<64x128xf32>
    %111 = arith.addf %108, %110 : vector<64x128xf32>
    %c320 = arith.constant 320 : index
    %c0_50 = arith.constant 0 : index
    %112 = vector.load %arg2[%c320, %c0_50] : memref<384x128xf32, #tpu.memory_space<vmem>>, vector<1x128xf32>
    %113 = vector.broadcast %112 : vector<1x128xf32> to vector<64x128xf32>
    %114 = arith.addf %111, %113 : vector<64x128xf32>
    %cst_51 = arith.constant 0.000000e+00 : f32
    %115 = vector.broadcast %cst_51 : f32 to vector<64x128xf32>
    %116 = arith.cmpf ogt, %114, %115 : vector<64x128xf32>
    %cst_52 = arith.constant 0.00999999977 : f32
    %117 = vector.broadcast %cst_52 : f32 to vector<64x128xf32>
    %118 = arith.mulf %117, %114 : vector<64x128xf32>
    %119 = arith.select %116, %114, %118 : vector<64x128xi1>, vector<64x128xf32>
    %120 = vector.extract_strided_slice %119 {offsets = [0, 0], sizes = [64, 32], strides = [1, 1]} : vector<64x128xf32> to vector<64x32xf32>
    %c336 = arith.constant 336 : index
    %c0_53 = arith.constant 0 : index
    %121 = vector.load %arg2[%c336, %c0_53] : memref<384x128xf32, #tpu.memory_space<vmem>>, vector<32x128xf32>
    %cst_54 = arith.constant dense<0.000000e+00> : vector<64x128xf32>
    %122 = tpu.matmul %120, %121, %cst_54 {dimension_numbers = #tpu.dot_dimension_numbers<[1], [0], [0], [1], [0, 0, 1, 1], [], []>} : vector<64x32xf32>, vector<32x128xf32>, vector<64x128xf32> -> vector<64x128xf32>
    %c368 = arith.constant 368 : index
    %c0_55 = arith.constant 0 : index
    %123 = vector.load %arg2[%c368, %c0_55] : memref<384x128xf32, #tpu.memory_space<vmem>>, vector<1x128xf32>
    %124 = vector.broadcast %123 : vector<1x128xf32> to vector<64x128xf32>
    %125 = arith.addf %122, %124 : vector<64x128xf32>
    %126 = vector.extract_strided_slice %125 {offsets = [0, 0], sizes = [64, 16], strides = [1, 1]} : vector<64x128xf32> to vector<64x16xf32>
    %127 = arith.addf %126, %18 : vector<64x16xf32>
    %c0_56 = arith.constant 0 : index
    %c0_57 = arith.constant 0 : index
    %128 = vector.load %arg3[%c0_56, %c0_57] : memref<64x16xf32, #tpu.memory_space<vmem>>, vector<64x16xf32>
    tpu.vector_store %arg3[%c0_56, %c0_57], %127 {strides = array<i32>} : memref<64x16xf32, #tpu.memory_space<vmem>>, vector<64x16xf32>,
    return
  }
}

</mosaic_0001>

<llo_original>
// kernel: tpu_custom_call.1
$region0: #{tpu_custom_call.1}
  #allocation0 [shape = 'u32[]', space=smem, size = 0x4, offset = 0x4, fixed_abs, tag = 'smem constant byte address 0x4 - core index']
  #allocation1 [shape = 'u32[72,128]{1,0:T(1,128)}', space=vmem, size = 0x9000, scoped, tag = 'internal scratch']
  %s0 = inlined_call_operand.vmem [shape: s32[64,1], index: 0, kind: input, shape index: {}]
  %s1 = inlined_call_operand.vmem [shape: f32[64,3], index: 1, kind: input, shape index: {}]
  %s2 = inlined_call_operand.hbm [shape: f32[384,128], index: 2, kind: input, shape index: {}]
  %s3 = inlined_call_operand.vmem [shape: f32[64,16], index: 3, kind: output, shape index: {}]
  %s4 = sld [smem:[#allocation0]]
  $region26: #{tpu_custom_call.1} parent=0
    _
  %s6 = ssub.s32 1, %s4
  %s7 = scalar_select 0, %s6, %s4
  $region1: #{tpu_custom_call.1} parent=0
    #allocation2 [shape = 'u8[196608]{0}', space=vmem, size = 0x30000, scoped, tag = 'input window, operand 2, single buffered']
    #allocation3 [shape = 's32[1]{0}', space=sflag, size = 0x4, scoped, tag = 'scoped memory for tpu_custom_call.1']
    %8 = vsyncpa [#allocation3], 0
    // Predicated region
    $region2: #{tpu_custom_call.1} parent=1 // pred_check
      _
    $region3: #{tpu_custom_call.1} parent=1 // pred_check_branch
      %10 = sbr.rel (0) target = $region5
    $region4: #{tpu_custom_call.1} parent=1 // pred_region
      _
    $region5: #{tpu_custom_call.1} parent=1 // pred_fallthru
      _
    // Predicated region
    $region6: #{tpu_custom_call.1} parent=1 // pred_check
      _
    $region7: #{tpu_custom_call.1} parent=1 // pred_check_branch
      %12 = sbr.rel (0) target = $region9
    $region8: #{tpu_custom_call.1} parent=1 // pred_region
      _
    $region9: #{tpu_custom_call.1} parent=1 // pred_fallthru
      _
    // Predicated region
    $region10: #{tpu_custom_call.1} parent=1 // pred_check
      _
    $region11: #{tpu_custom_call.1} parent=1 // pred_check_branch
      %14 = sbr.rel (0) target = $region13
    $region12: #{tpu_custom_call.1} parent=1 // pred_region
      %16 = vsyncadd [#allocation3], 0
      %s17 = sshll.u32 %s2, 4
      %s18 = int_to_ptr.hbm [resolvable:$true] %s17
      %s19 = sshll.u32 [#allocation2], 4
      %s20 = int_to_ptr.vmem [resolvable:$true] %s19
      %25 = dma.hbm_to_vmem [thread:$0]  %s18, 6144, %s20, [#allocation3], 128, 128, 8
    $region13: #{tpu_custom_call.1} parent=1 // pred_fallthru
      _
    // Predicated region
    $region14: #{tpu_custom_call.1} parent=1 // pred_check
      _
    $region15: #{tpu_custom_call.1} parent=1 // pred_check_branch
      %27 = sbr.rel (0) target = $region17
    $region16: #{tpu_custom_call.1} parent=1 // pred_region
      %29 = dma.done [#allocation3], 6144
    $region17: #{tpu_custom_call.1} parent=1 // pred_fallthru
      _
    %v30 = vld [vmem:[%s1] sm:$0xff]
    %v31 = vld [vmem:[%s1 + $0x8] sm:$0xff]
    %v32 = vld [vmem:[%s1 + $0x10] sm:$0xff]
    %v33 = vld [vmem:[%s1 + $0x18] sm:$0xff]
    %v34 = vld [vmem:[%s1 + $0x20] sm:$0xff]
    %v35 = vld [vmem:[%s1 + $0x28] sm:$0xff]
    %v36 = vld [vmem:[%s1 + $0x30] sm:$0xff]
    %v37 = vld [vmem:[%s1 + $0x38] sm:$0xff]
    %v38 = vld [vmem:[%s0] sm:$0xff]
    %v39 = vld [vmem:[%s0 + $0x8] sm:$0xff]
    %v40 = vld [vmem:[%s0 + $0x10] sm:$0xff]
    %v41 = vld [vmem:[%s0 + $0x18] sm:$0xff]
    %v42 = vld [vmem:[%s0 + $0x20] sm:$0xff]
    %v43 = vld [vmem:[%s0 + $0x28] sm:$0xff]
    %v44 = vld [vmem:[%s0 + $0x30] sm:$0xff]
    %v45 = vld [vmem:[%s0 + $0x38] sm:$0xff]
    %v46 = vld [vmem:[#allocation2] sm:$0x7]
    %v47 = vld [vmem:[#allocation2 + $0x10] sm:$0x1]
    %v48 = vperm.slane %v47, 0
    %vm49 = vcmask 23552
    %v51 = vsel %vm49, %v30, 0
    %v54 = vsel %vm49, %v31, 0
    %v57 = vsel %vm49, %v32, 0
    %v60 = vsel %vm49, %v33, 0
    %v63 = vsel %vm49, %v34, 0
    %v66 = vsel %vm49, %v35, 0
    %v69 = vsel %vm49, %v36, 0
    %v72 = vsel %vm49, %v37, 0
    %vm74 = vcmask 1042432
    %v76 = vsel %vm74, %v46, 0
    %78 = vmatpush.msra.mxu0 0.0
    %79 = vmatpush.msra.mxu0 0.0
    %80 = vmatpush.msra.mxu0 0.0
    %81 = vmatpush.msra.mxu0 0.0
    %82 = vmatpush.msra.mxu0 0.0
    %83 = vmatpush.msra.mxu0 0.0
    %84 = vmatpush.msra.mxu0 0.0
    %85 = vmatpush.msra.mxu0 0.0
    %86 = vmatpush.msra.mxu0 0.0
    %87 = vmatpush.msra.mxu0 0.0
    %88 = vmatpush.msra.mxu0 0.0
    %89 = vmatpush.msra.mxu0 0.0
    %90 = vmatpush.msra.mxu0 0.0
    %91 = vmatpush.msra.mxu0 0.0
    %92 = vmatpush.msra.mxu0 0.0
    %93 = vmatpush.msra.mxu0 %v76
    %94 = vmatmul.f32.gmra.mxu0 %v51
    %v95 = vpop.f32.mrf.mxu0
    %v96 = vadd.f32 %v48, %v95
    %97 = vmatmul.f32.gmra.mxu0 %v54
    %v98 = vpop.f32.mrf.mxu0
    %v99 = vadd.f32 %v48, %v98
    %100 = vmatmul.f32.gmra.mxu0 %v57
    %v101 = vpop.f32.mrf.mxu0
    %v102 = vadd.f32 %v48, %v101
    %103 = vmatmul.f32.gmra.mxu0 %v60
    %v104 = vpop.f32.mrf.mxu0
    %v105 = vadd.f32 %v48, %v104
    %106 = vmatmul.f32.gmra.mxu0 %v63
    %v107 = vpop.f32.mrf.mxu0
    %v108 = vadd.f32 %v48, %v107
    %109 = vmatmul.f32.gmra.mxu0 %v66
    %v110 = vpop.f32.mrf.mxu0
    %v111 = vadd.f32 %v48, %v110
    %112 = vmatmul.f32.gmra.mxu0 %v69
    %v113 = vpop.f32.mrf.mxu0
    %v114 = vadd.f32 %v48, %v113
    %115 = vmatmul.f32.gmra.mxu0 %v72
    %v116 = vpop.f32.mrf.mxu0
    %v117 = vadd.f32 %v48, %v116
    %118 = vdwg.mxu0
    %vm119 = vcmp.gt.f32.partialorder %v96, 0.0
    %vm120 = vcmp.gt.f32.partialorder %v99, 0.0
    %vm121 = vcmp.gt.f32.partialorder %v102, 0.0
    %vm122 = vcmp.gt.f32.partialorder %v105, 0.0
    %vm123 = vcmp.gt.f32.partialorder %v108, 0.0
    %vm124 = vcmp.gt.f32.partialorder %v111, 0.0
    %vm125 = vcmp.gt.f32.partialorder %v114, 0.0
    %vm126 = vcmp.gt.f32.partialorder %v117, 0.0
    %v127 = vmul.f32 %v96, 0.01
    %v128 = vmul.f32 %v99, 0.01
    %v129 = vmul.f32 %v102, 0.01
    %v130 = vmul.f32 %v105, 0.01
    %v131 = vmul.f32 %v108, 0.01
    %v132 = vmul.f32 %v111, 0.01
    %v133 = vmul.f32 %v114, 0.01
    %v134 = vmul.f32 %v117, 0.01
    %v135 = vsel %vm119, %v96, %v127
    %v136 = vsel %vm120, %v99, %v128
    %v137 = vsel %vm121, %v102, %v129
    %v138 = vsel %vm122, %v105, %v130
    %v139 = vsel %vm123, %v108, %v131
    %v140 = vsel %vm124, %v111, %v132
    %v141 = vsel %vm125, %v114, %v133
    %v142 = vsel %vm126, %v117, %v134
    %v143 = vld [vmem:[#allocation2 + $0x20] sm:$0xff]
    %v144 = vld [vmem:[#allocation2 + $0x28] sm:$0xff]
    %v145 = vld [vmem:[#allocation2 + $0x30] sm:$0xff]
    %v146 = vld [vmem:[#allocation2 + $0x38] sm:$0xff]
    %v147 = vld [vmem:[#allocation2 + $0x40] sm:$0x1]
    %v148 = vperm.slane %v147, 0
    %vm149 = vcmask 261120
    %v151 = vsel %vm149, %v135, 0
    %v154 = vsel %vm149, %v136, 0
    %v157 = vsel %vm149, %v137, 0
    %v160 = vsel %vm149, %v138, 0
    %v163 = vsel %vm149, %v139, 0
    %v166 = vsel %vm149, %v140, 0
    %v169 = vsel %vm149, %v141, 0
    %v172 = vsel %vm149, %v142, 0
    %174 = vmatpush.msra.mxu0 0.0
    %175 = vmatpush.msra.mxu0 0.0
    %176 = vmatpush.msra.mxu0 0.0
    %177 = vmatpush.msra.mxu0 0.0
    %178 = vmatpush.msra.mxu0 0.0
    %179 = vmatpush.msra.mxu0 0.0
    %180 = vmatpush.msra.mxu0 0.0
    %181 = vmatpush.msra.mxu0 0.0
    %182 = vmatpush.msra.mxu0 0.0
    %183 = vmatpush.msra.mxu0 0.0
    %184 = vmatpush.msra.mxu0 0.0
    %185 = vmatpush.msra.mxu0 0.0
    %186 = vmatpush.msra.mxu0 %v146
    %187 = vmatpush.msra.mxu0 %v145
    %188 = vmatpush.msra.mxu0 %v144
    %189 = vmatpush.msra.mxu0 %v143
    %190 = vmatmul.f32.gmra.mxu0 %v151
    %v191 = vpop.f32.mrf.mxu0
    %v192 = vadd.f32 %v148, %v191
    %193 = vmatmul.f32.gmra.mxu0 %v154
    %v194 = vpop.f32.mrf.mxu0
    %v195 = vadd.f32 %v148, %v194
    %196 = vmatmul.f32.gmra.mxu0 %v157
    %v197 = vpop.f32.mrf.mxu0
    %v198 = vadd.f32 %v148, %v197
    %199 = vmatmul.f32.gmra.mxu0 %v160
    %v200 = vpop.f32.mrf.mxu0
    %v201 = vadd.f32 %v148, %v200
    %202 = vmatmul.f32.gmra.mxu0 %v163
    %v203 = vpop.f32.mrf.mxu0
    %v204 = vadd.f32 %v148, %v203
    %205 = vmatmul.f32.gmra.mxu0 %v166
    %v206 = vpop.f32.mrf.mxu0
    %v207 = vadd.f32 %v148, %v206
    %208 = vmatmul.f32.gmra.mxu0 %v169
    %v209 = vpop.f32.mrf.mxu0
    %v210 = vadd.f32 %v148, %v209
    %211 = vmatmul.f32.gmra.mxu0 %v172
    %v212 = vpop.f32.mrf.mxu0
    %v213 = vadd.f32 %v148, %v212
    %214 = vdwg.mxu0
    %v215 = vld [vmem:[#allocation2 + $0x50] sm:$0xff]
    %v216 = vld [vmem:[#allocation2 + $0x58] sm:$0xff]
    %v217 = vld [vmem:[#allocation2 + $0x60] sm:$0x1]
    %v218 = vperm.slane %v217, 0
    %vm219 = vcmask 130048
    %v221 = vsel %vm219, %v192, 0
    %v224 = vsel %vm219, %v195, 0
    %v227 = vsel %vm219, %v198, 0
    %v230 = vsel %vm219, %v201, 0
    %v233 = vsel %vm219, %v204, 0
    %v236 = vsel %vm219, %v207, 0
    %v239 = vsel %vm219, %v210, 0
    %v242 = vsel %vm219, %v213, 0
    %244 = vmatpush.msra.mxu0 0.0
    %245 = vmatpush.msra.mxu0 0.0
    %246 = vmatpush.msra.mxu0 0.0
    %247 = vmatpush.msra.mxu0 0.0
    %248 = vmatpush.msra.mxu0 0.0
    %249 = vmatpush.msra.mxu0 0.0
    %250 = vmatpush.msra.mxu0 0.0
    %251 = vmatpush.msra.mxu0 0.0
    %252 = vmatpush.msra.mxu0 0.0
    %253 = vmatpush.msra.mxu0 0.0
    %254 = vmatpush.msra.mxu0 0.0
    %255 = vmatpush.msra.mxu0 0.0
    %256 = vmatpush.msra.mxu0 0.0
    %257 = vmatpush.msra.mxu0 0.0
    %258 = vmatpush.msra.mxu0 %v216
    %259 = vmatpush.msra.mxu0 %v215
    %260 = vmatmul.f32.gmra.mxu0 %v221
    %v261 = vpop.f32.mrf.mxu0
    %v262 = vadd.f32 %v218, %v261
    %263 = vmatmul.f32.gmra.mxu0 %v224
    %v264 = vpop.f32.mrf.mxu0
    %v265 = vadd.f32 %v218, %v264
    %266 = vmatmul.f32.gmra.mxu0 %v227
    %v267 = vpop.f32.mrf.mxu0
    %v268 = vadd.f32 %v218, %v267
    %269 = vmatmul.f32.gmra.mxu0 %v230
    %v270 = vpop.f32.mrf.mxu0
    %v271 = vadd.f32 %v218, %v270
    %272 = vmatmul.f32.gmra.mxu0 %v233
    %v273 = vpop.f32.mrf.mxu0
    %v274 = vadd.f32 %v218, %v273
    %275 = vmatmul.f32.gmra.mxu0 %v236
    %v276 = vpop.f32.mrf.mxu0
    %v277 = vadd.f32 %v218, %v276
    %278 = vmatmul.f32.gmra.mxu0 %v239
    %v279 = vpop.f32.mrf.mxu0
    %v280 = vadd.f32 %v218, %v279
    %281 = vmatmul.f32.gmra.mxu0 %v242
    %v282 = vpop.f32.mrf.mxu0
    %v283 = vadd.f32 %v218, %v282
    %284 = vdwg.mxu0
    %vm285 = vcmp.gt.f32.partialorder %v262, 0.0
    %vm286 = vcmp.gt.f32.partialorder %v265, 0.0
    %vm287 = vcmp.gt.f32.partialorder %v268, 0.0
    %vm288 = vcmp.gt.f32.partialorder %v271, 0.0
    %vm289 = vcmp.gt.f32.partialorder %v274, 0.0
    %vm290 = vcmp.gt.f32.partialorder %v277, 0.0
    %vm291 = vcmp.gt.f32.partialorder %v280, 0.0
    %vm292 = vcmp.gt.f32.partialorder %v283, 0.0
    %v293 = vmul.f32 %v262, 0.01
    %v294 = vmul.f32 %v265, 0.01
    %v295 = vmul.f32 %v268, 0.01
    %v296 = vmul.f32 %v271, 0.01
    %v297 = vmul.f32 %v274, 0.01
    %v298 = vmul.f32 %v277, 0.01
    %v299 = vmul.f32 %v280, 0.01
    %v300 = vmul.f32 %v283, 0.01
    %v301 = vsel %vm285, %v262, %v293
    %v302 = vsel %vm286, %v265, %v294
    %v303 = vsel %vm287, %v268, %v295
    %v304 = vsel %vm288, %v271, %v296
    %v305 = vsel %vm289, %v274, %v297
    %v306 = vsel %vm290, %v277, %v298
    %v307 = vsel %vm291, %v280, %v299
    %v308 = vsel %vm292, %v283, %v300
    %v309 = vld [vmem:[#allocation2 + $0x70] sm:$0xff]
    %v310 = vld [vmem:[#allocation2 + $0x78] sm:$0xff]
    %v311 = vld [vmem:[#allocation2 + $0x80] sm:$0xff]
    %v312 = vld [vmem:[#allocation2 + $0x88] sm:$0xff]
    %v313 = vld [vmem:[#allocation2 + $0x90] sm:$0x1]
    %v314 = vperm.slane %v313, 0
    %v316 = vsel %vm149, %v301, 0
    %v319 = vsel %vm149, %v302, 0
    %v322 = vsel %vm149, %v303, 0
    %v325 = vsel %vm149, %v304, 0
    %v328 = vsel %vm149, %v305, 0
    %v331 = vsel %vm149, %v306, 0
    %v334 = vsel %vm149, %v307, 0
    %v337 = vsel %vm149, %v308, 0
    %339 = vmatpush.msra.mxu0 0.0
    %340 = vmatpush.msra.mxu0 0.0
    %341 = vmatpush.msra.mxu0 0.0
    %342 = vmatpush.msra.mxu0 0.0
    %343 = vmatpush.msra.mxu0 0.0
    %344 = vmatpush.msra.mxu0 0.0
    %345 = vmatpush.msra.mxu0 0.0
    %346 = vmatpush.msra.mxu0 0.0
    %347 = vmatpush.msra.mxu0 0.0
    %348 = vmatpush.msra.mxu0 0.0
    %349 = vmatpush.msra.mxu0 0.0
    %350 = vmatpush.msra.mxu0 0.0
    %351 = vmatpush.msra.mxu0 %v312
    %352 = vmatpush.msra.mxu0 %v311
    %353 = vmatpush.msra.mxu0 %v310
    %354 = vmatpush.msra.mxu0 %v309
    %355 = vmatmul.f32.gmra.mxu0 %v316
    %v356 = vpop.f32.mrf.mxu0
    %v357 = vadd.f32 %v314, %v356
    %358 = vmatmul.f32.gmra.mxu0 %v319
    %v359 = vpop.f32.mrf.mxu0
    %v360 = vadd.f32 %v314, %v359
    %361 = vmatmul.f32.gmra.mxu0 %v322
    %v362 = vpop.f32.mrf.mxu0
    %v363 = vadd.f32 %v314, %v362
    %364 = vmatmul.f32.gmra.mxu0 %v325
    %v365 = vpop.f32.mrf.mxu0
    %v366 = vadd.f32 %v314, %v365
    %367 = vmatmul.f32.gmra.mxu0 %v328
    %v368 = vpop.f32.mrf.mxu0
    %v369 = vadd.f32 %v314, %v368
    %370 = vmatmul.f32.gmra.mxu0 %v331
    %v371 = vpop.f32.mrf.mxu0
    %v372 = vadd.f32 %v314, %v371
    %373 = vmatmul.f32.gmra.mxu0 %v334
    %v374 = vpop.f32.mrf.mxu0
    %v375 = vadd.f32 %v314, %v374
    %376 = vmatmul.f32.gmra.mxu0 %v337
    %v377 = vpop.f32.mrf.mxu0
    %v378 = vadd.f32 %v314, %v377
    %379 = vdwg.mxu0
    %vm380 = vcmp.gt.f32.partialorder %v357, 0.0
    %vm381 = vcmp.gt.f32.partialorder %v360, 0.0
    %vm382 = vcmp.gt.f32.partialorder %v363, 0.0
    %vm383 = vcmp.gt.f32.partialorder %v366, 0.0
    %vm384 = vcmp.gt.f32.partialorder %v369, 0.0
    %vm385 = vcmp.gt.f32.partialorder %v372, 0.0
    %vm386 = vcmp.gt.f32.partialorder %v375, 0.0
    %vm387 = vcmp.gt.f32.partialorder %v378, 0.0
    %v388 = vmul.f32 %v357, 0.01
    %v389 = vmul.f32 %v360, 0.01
    %v390 = vmul.f32 %v363, 0.01
    %v391 = vmul.f32 %v366, 0.01
    %v392 = vmul.f32 %v369, 0.01
    %v393 = vmul.f32 %v372, 0.01
    %v394 = vmul.f32 %v375, 0.01
    %v395 = vmul.f32 %v378, 0.01
    %v396 = vsel %vm380, %v357, %v388
    %v397 = vsel %vm381, %v360, %v389
    %v398 = vsel %vm382, %v363, %v390
    %v399 = vsel %vm383, %v366, %v391
    %v400 = vsel %vm384, %v369, %v392
    %v401 = vsel %vm385, %v372, %v393
    %v402 = vsel %vm386, %v375, %v394
    %v403 = vsel %vm387, %v378, %v395
    %v404 = vlaneseq
    %v405 = vand.u32 %v404, 127
    %406 = vset.pattern.permute.xlu0 0
    %407 = vperm.xlu0 %406, %v38
    %v408 = vpop.permute.xlu0 %407
    %409 = vset.pattern.permute.xlu0 0
    %410 = vperm.xlu0 %409, %v39
    %v411 = vpop.permute.xlu0 %410
    %412 = vset.pattern.permute.xlu0 0
    %413 = vperm.xlu0 %412, %v40
    %v414 = vpop.permute.xlu0 %413
    %415 = vset.pattern.permute.xlu0 0
    %416 = vperm.xlu0 %415, %v41
    %v417 = vpop.permute.xlu0 %416
    %418 = vset.pattern.permute.xlu0 0
    %419 = vperm.xlu0 %418, %v42
    %v420 = vpop.permute.xlu0 %419
    %421 = vset.pattern.permute.xlu0 0
    %422 = vperm.xlu0 %421, %v43
    %v423 = vpop.permute.xlu0 %422
    %424 = vset.pattern.permute.xlu0 0
    %425 = vperm.xlu0 %424, %v44
    %v426 = vpop.permute.xlu0 %425
    %427 = vset.pattern.permute.xlu0 0
    %428 = vperm.xlu0 %427, %v45
    %v429 = vpop.permute.xlu0 %428
    %vm430 = vcmp.eq.s32.totalorder %v408, %v405
    %vm431 = vcmp.eq.s32.totalorder %v411, %v405
    %vm432 = vcmp.eq.s32.totalorder %v414, %v405
    %vm433 = vcmp.eq.s32.totalorder %v417, %v405
    %vm434 = vcmp.eq.s32.totalorder %v420, %v405
    %vm435 = vcmp.eq.s32.totalorder %v423, %v405
    %vm436 = vcmp.eq.s32.totalorder %v426, %v405
    %vm437 = vcmp.eq.s32.totalorder %v429, %v405
    %v438 = vsel %vm430, 1, 0
    %v439 = vsel %vm431, 1, 0
    %v440 = vsel %vm432, 1, 0
    %v441 = vsel %vm433, 1, 0
    %v442 = vsel %vm434, 1, 0
    %v443 = vsel %vm435, 1, 0
    %v444 = vsel %vm436, 1, 0
    %v445 = vsel %vm437, 1, 0
    %v446 = vcvt.s32.f32 %v438
    %v447 = vcvt.s32.f32 %v439
    %v448 = vcvt.s32.f32 %v440
    %v449 = vcvt.s32.f32 %v441
    %v450 = vcvt.s32.f32 %v442
    %v451 = vcvt.s32.f32 %v443
    %v452 = vcvt.s32.f32 %v444
    %v453 = vcvt.s32.f32 %v445
    %454 = vxpose.xlu0.b32.start [1/16] %v446, 128
    %455 = vxpose.xlu0.b32.cont [2/16] %v447, 128
    %456 = vxpose.xlu0.b32.cont [3/16] %v448, 128
    %457 = vxpose.xlu0.b32.cont [4/16] %v449, 128
    %458 = vxpose.xlu0.b32.cont [5/16] %v450, 128
    %459 = vxpose.xlu0.b32.cont [6/16] %v451, 128
    %460 = vxpose.xlu0.b32.cont [7/16] %v452, 128
    %461 = vxpose.xlu0.b32.cont [8/16] %v453, 128
    %462 = vxpose.xlu0.b32.cont [9/16] 0.0, 128
    %463 = vxpose.xlu0.b32.cont [10/16] 0.0, 128
    %464 = vxpose.xlu0.b32.cont [11/16] 0.0, 128
    %465 = vxpose.xlu0.b32.cont [12/16] 0.0, 128
    %466 = vxpose.xlu0.b32.cont [13/16] 0.0, 128
    %467 = vxpose.xlu0.b32.cont [14/16] 0.0, 128
    %468 = vxpose.xlu0.b32.cont [15/16] 0.0, 128
    %469 = vxpose.xlu0.b32.end [16/16] 0.0, 128
    %v470 = vpop.trf.xlu0
    %v471 = vpop.trf.xlu0
    %v472 = vpop.trf.xlu0
    %v473 = vpop.trf.xlu0
    %v474 = vpop.trf.xlu0
    %v475 = vpop.trf.xlu0
    %v476 = vpop.trf.xlu0
    %v477 = vpop.trf.xlu0
    %v478 = vpop.trf.xlu0
    %v479 = vpop.trf.xlu0
    %v480 = vpop.trf.xlu0
    %v481 = vpop.trf.xlu0
    %v482 = vpop.trf.xlu0
    %v483 = vpop.trf.xlu0
    %v484 = vpop.trf.xlu0
    %v485 = vpop.trf.xlu0
    %vm486 = vcmask 519168
    %v487 = vsel %vm486, %v470, 0.0
    %488 = vadd.xlane.f32.xlu0 %v487
    %v489 = vpop.xlane.xlu0 %488
    %v490 = vmax.f32 %v489, 1.0
    %v491 = vrcp.pop %v490
    %v492 = vmul.f32 %v490, %v491
    %v493 = vsub.f32 1.0, %v492
    %v494 = vmul.f32 %v491, %v493
    %v495 = vadd.f32 %v491, %v494
    %vm496 = vweird.f32 %v490
    %vm497 = vweird.f32 %v491
    %vm498 = vmor %vm496, %vm497
    %v499 = vsel %vm498, %v491, %v495
    %v500 = vand.u32 2147483647, %v490
    %vm501 = vcmp.eq.f32.partialorder %v500, 8.507059e+37
    %v502 = vand.u32 %v490, 2147483648
    %v503 = vor.u32 1.1754944e-38, %v502
    %v504 = vsel %vm501, %v503, %v499
    %v505 = vmul.f32 1.0, %v504
    %vm506 = vcmask 523264
    %v508 = vsel %vm506, %v470, 0
    %510 = vmatpush.msra.mxu0 0.0
    %511 = vmatpush.msra.mxu0 0.0
    %512 = vmatpush.msra.mxu0 0.0
    %513 = vmatpush.msra.mxu0 0.0
    %514 = vmatpush.msra.mxu0 0.0
    %515 = vmatpush.msra.mxu0 0.0
    %516 = vmatpush.msra.mxu0 0.0
    %517 = vmatpush.msra.mxu0 0.0
    %518 = vmatpush.msra.mxu0 %v403
    %519 = vmatpush.msra.mxu0 %v402
    %520 = vmatpush.msra.mxu0 %v401
    %521 = vmatpush.msra.mxu0 %v400
    %522 = vmatpush.msra.mxu0 %v399
    %523 = vmatpush.msra.mxu0 %v398
    %524 = vmatpush.msra.mxu0 %v397
    %525 = vmatpush.msra.mxu0 %v396
    %526 = vmatmul.f32.gmra.mxu0 %v508
    %v527 = vpop.f32.mrf.mxu0
    %v528 = vadd.f32 0.0, %v527
    %529 = vdwg.mxu0
    %v530 = vmul.f32 %v528, %v505
    %vm531 = vcmask 31744
    %v533 = vsel %vm531, %v446, 0
    %v536 = vsel %vm531, %v447, 0
    %v539 = vsel %vm531, %v448, 0
    %v542 = vsel %vm531, %v449, 0
    %v545 = vsel %vm531, %v450, 0
    %v548 = vsel %vm531, %v451, 0
    %v551 = vsel %vm531, %v452, 0
    %v554 = vsel %vm531, %v453, 0
    %vm556 = vcmask 1043456
    %v558 = vsel %vm556, %v530, 0
    %560 = vmatpush.msra.mxu0 0.0
    %561 = vmatpush.msra.mxu0 0.0
    %562 = vmatpush.msra.mxu0 0.0
    %563 = vmatpush.msra.mxu0 0.0
    %564 = vmatpush.msra.mxu0 0.0
    %565 = vmatpush.msra.mxu0 0.0
    %566 = vmatpush.msra.mxu0 0.0
    %567 = vmatpush.msra.mxu0 0.0
    %568 = vmatpush.msra.mxu0 0.0
    %569 = vmatpush.msra.mxu0 0.0
    %570 = vmatpush.msra.mxu0 0.0
    %571 = vmatpush.msra.mxu0 0.0
    %572 = vmatpush.msra.mxu0 0.0
    %573 = vmatpush.msra.mxu0 0.0
    %574 = vmatpush.msra.mxu0 0.0
    %575 = vmatpush.msra.mxu0 %v558
    %576 = vmatmul.f32.gmra.mxu0 %v533
    %v577 = vpop.f32.mrf.mxu0
    %v578 = vadd.f32 0.0, %v577
    %579 = vmatmul.f32.gmra.mxu0 %v536
    %v580 = vpop.f32.mrf.mxu0
    %v581 = vadd.f32 0.0, %v580
    %582 = vmatmul.f32.gmra.mxu0 %v539
    %v583 = vpop.f32.mrf.mxu0
    %v584 = vadd.f32 0.0, %v583
    %585 = vmatmul.f32.gmra.mxu0 %v542
    %v586 = vpop.f32.mrf.mxu0
    %v587 = vadd.f32 0.0, %v586
    %588 = vmatmul.f32.gmra.mxu0 %v545
    %v589 = vpop.f32.mrf.mxu0
    %v590 = vadd.f32 0.0, %v589
    %591 = vmatmul.f32.gmra.mxu0 %v548
    %v592 = vpop.f32.mrf.mxu0
    %v593 = vadd.f32 0.0, %v592
    %594 = vmatmul.f32.gmra.mxu0 %v551
    %v595 = vpop.f32.mrf.mxu0
    %v596 = vadd.f32 0.0, %v595
    %597 = vmatmul.f32.gmra.mxu0 %v554
    %v598 = vpop.f32.mrf.mxu0
    %v599 = vadd.f32 0.0, %v598
    %600 = vdwg.mxu0
    %v601 = vsub.f32 %v396, %v578
    %v602 = vsub.f32 %v397, %v581
    %v603 = vsub.f32 %v398, %v584
    %v604 = vsub.f32 %v399, %v587
    %v605 = vsub.f32 %v400, %v590
    %v606 = vsub.f32 %v401, %v593
    %v607 = vsub.f32 %v402, %v596
    %v608 = vsub.f32 %v403, %v599
    %v609 = vand.u32 2147483647, %v601
    %v610 = vand.u32 2147483647, %v602
    %v611 = vand.u32 2147483647, %v603
    %v612 = vand.u32 2147483647, %v604
    %v613 = vand.u32 2147483647, %v605
    %v614 = vand.u32 2147483647, %v606
    %v615 = vand.u32 2147483647, %v607
    %v616 = vand.u32 2147483647, %v608
    %617 = vmatpush.msra.mxu0 0.0
    %618 = vmatpush.msra.mxu0 0.0
    %619 = vmatpush.msra.mxu0 0.0
    %620 = vmatpush.msra.mxu0 0.0
    %621 = vmatpush.msra.mxu0 0.0
    %622 = vmatpush.msra.mxu0 0.0
    %623 = vmatpush.msra.mxu0 0.0
    %624 = vmatpush.msra.mxu0 0.0
    %625 = vmatpush.msra.mxu0 %v616
    %626 = vmatpush.msra.mxu0 %v615
    %627 = vmatpush.msra.mxu0 %v614
    %628 = vmatpush.msra.mxu0 %v613
    %629 = vmatpush.msra.mxu0 %v612
    %630 = vmatpush.msra.mxu0 %v611
    %631 = vmatpush.msra.mxu0 %v610
    %632 = vmatpush.msra.mxu0 %v609
    %633 = vmatmul.f32.gmra.mxu0 %v508
    %v634 = vpop.f32.mrf.mxu0
    %v635 = vadd.f32 0.0, %v634
    %636 = vdwg.mxu0
    %v637 = vmul.f32 %v635, %v505
    %v638 = vperm.slane %v470, 0
    %v639 = vlaneseq
    %v640 = vshrl.u32 %v639, 7
    %642 = vset.pattern.permute.xlu0 %v640
    %643 = vperm.xlu0 %642, %v638
    %v644 = vpop.permute.xlu0 %643
    %v645 = vlaneseq
    %v646 = vshrl.u32 %v645, 7
    %v647 = vadd.s32 %v646, 8
    %648 = vset.pattern.permute.xlu0 %v647
    %649 = vperm.xlu0 %648, %v638
    %v650 = vpop.permute.xlu0 %649
    %v651 = vlaneseq
    %v652 = vshrl.u32 %v651, 7
    %v653 = vadd.s32 %v652, 16
    %654 = vset.pattern.permute.xlu0 %v653
    %655 = vperm.xlu0 %654, %v638
    %v656 = vpop.permute.xlu0 %655
    %v657 = vlaneseq
    %v658 = vshrl.u32 %v657, 7
    %v659 = vadd.s32 %v658, 24
    %660 = vset.pattern.permute.xlu0 %v659
    %661 = vperm.xlu0 %660, %v638
    %v662 = vpop.permute.xlu0 %661
    %v663 = vlaneseq
    %v664 = vshrl.u32 %v663, 7
    %v665 = vadd.s32 %v664, 32
    %666 = vset.pattern.permute.xlu0 %v665
    %667 = vperm.xlu0 %666, %v638
    %v668 = vpop.permute.xlu0 %667
    %v669 = vlaneseq
    %v670 = vshrl.u32 %v669, 7
    %v671 = vadd.s32 %v670, 40
    %672 = vset.pattern.permute.xlu0 %v671
    %673 = vperm.xlu0 %672, %v638
    %v674 = vpop.permute.xlu0 %673
    %v675 = vlaneseq
    %v676 = vshrl.u32 %v675, 7
    %v677 = vadd.s32 %v676, 48
    %678 = vset.pattern.permute.xlu0 %v677
    %679 = vperm.xlu0 %678, %v638
    %v680 = vpop.permute.xlu0 %679
    %v681 = vlaneseq
    %v682 = vshrl.u32 %v681, 7
    %v683 = vadd.s32 %v682, 56
    %684 = vset.pattern.permute.xlu0 %v683
    %685 = vperm.xlu0 %684, %v638
    %v686 = vpop.permute.xlu0 %685
    %v687 = vperm.slane %v470, 1
    %v688 = vlaneseq
    %v689 = vshrl.u32 %v688, 7
    %691 = vset.pattern.permute.xlu0 %v689
    %692 = vperm.xlu0 %691, %v687
    %v693 = vpop.permute.xlu0 %692
    %v694 = vlaneseq
    %v695 = vshrl.u32 %v694, 7
    %v696 = vadd.s32 %v695, 8
    %697 = vset.pattern.permute.xlu0 %v696
    %698 = vperm.xlu0 %697, %v687
    %v699 = vpop.permute.xlu0 %698
    %v700 = vlaneseq
    %v701 = vshrl.u32 %v700, 7
    %v702 = vadd.s32 %v701, 16
    %703 = vset.pattern.permute.xlu0 %v702
    %704 = vperm.xlu0 %703, %v687
    %v705 = vpop.permute.xlu0 %704
    %v706 = vlaneseq
    %v707 = vshrl.u32 %v706, 7
    %v708 = vadd.s32 %v707, 24
    %709 = vset.pattern.permute.xlu0 %v708
    %710 = vperm.xlu0 %709, %v687
    %v711 = vpop.permute.xlu0 %710
    %v712 = vlaneseq
    %v713 = vshrl.u32 %v712, 7
    %v714 = vadd.s32 %v713, 32
    %715 = vset.pattern.permute.xlu0 %v714
    %716 = vperm.xlu0 %715, %v687
    %v717 = vpop.permute.xlu0 %716
    %v718 = vlaneseq
    %v719 = vshrl.u32 %v718, 7
    %v720 = vadd.s32 %v719, 40
    %721 = vset.pattern.permute.xlu0 %v720
    %722 = vperm.xlu0 %721, %v687
    %v723 = vpop.permute.xlu0 %722
    %v724 = vlaneseq
    %v725 = vshrl.u32 %v724, 7
    %v726 = vadd.s32 %v725, 48
    %727 = vset.pattern.permute.xlu0 %v726
    %728 = vperm.xlu0 %727, %v687
    %v729 = vpop.permute.xlu0 %728
    %v730 = vlaneseq
    %v731 = vshrl.u32 %v730, 7
    %v732 = vadd.s32 %v731, 56
    %733 = vset.pattern.permute.xlu0 %v732
    %734 = vperm.xlu0 %733, %v687
    %v735 = vpop.permute.xlu0 %734
    %v736 = vperm.slane %v470, 2
    %v737 = vlaneseq
    %v738 = vshrl.u32 %v737, 7
    %740 = vset.pattern.permute.xlu0 %v738
    %741 = vperm.xlu0 %740, %v736
    %v742 = vpop.permute.xlu0 %741
    %v743 = vlaneseq
    %v744 = vshrl.u32 %v743, 7
    %v745 = vadd.s32 %v744, 8
    %746 = vset.pattern.permute.xlu0 %v745
    %747 = vperm.xlu0 %746, %v736
    %v748 = vpop.permute.xlu0 %747
    %v749 = vlaneseq
    %v750 = vshrl.u32 %v749, 7
    %v751 = vadd.s32 %v750, 16
    %752 = vset.pattern.permute.xlu0 %v751
    %753 = vperm.xlu0 %752, %v736
    %v754 = vpop.permute.xlu0 %753
    %v755 = vlaneseq
    %v756 = vshrl.u32 %v755, 7
    %v757 = vadd.s32 %v756, 24
    %758 = vset.pattern.permute.xlu0 %v757
    %759 = vperm.xlu0 %758, %v736
    %v760 = vpop.permute.xlu0 %759
    %v761 = vlaneseq
    %v762 = vshrl.u32 %v761, 7
    %v763 = vadd.s32 %v762, 32
    %764 = vset.pattern.permute.xlu0 %v763
    %765 = vperm.xlu0 %764, %v736
    %v766 = vpop.permute.xlu0 %765
    %v767 = vlaneseq
    %v768 = vshrl.u32 %v767, 7
    %v769 = vadd.s32 %v768, 40
    %770 = vset.pattern.permute.xlu0 %v769
    %771 = vperm.xlu0 %770, %v736
    %v772 = vpop.permute.xlu0 %771
    %v773 = vlaneseq
    %v774 = vshrl.u32 %v773, 7
    %v775 = vadd.s32 %v774, 48
    %776 = vset.pattern.permute.xlu0 %v775
    %777 = vperm.xlu0 %776, %v736
    %v778 = vpop.permute.xlu0 %777
    %v779 = vlaneseq
    %v780 = vshrl.u32 %v779, 7
    %v781 = vadd.s32 %v780, 56
    %782 = vset.pattern.permute.xlu0 %v781
    %783 = vperm.xlu0 %782, %v736
    %v784 = vpop.permute.xlu0 %783
    %v785 = vperm.slane %v470, 3
    %v786 = vlaneseq
    %v787 = vshrl.u32 %v786, 7
    %789 = vset.pattern.permute.xlu0 %v787
    %790 = vperm.xlu0 %789, %v785
    %v791 = vpop.permute.xlu0 %790
    %v792 = vlaneseq
    %v793 = vshrl.u32 %v792, 7
    %v794 = vadd.s32 %v793, 8
    %795 = vset.pattern.permute.xlu0 %v794
    %796 = vperm.xlu0 %795, %v785
    %v797 = vpop.permute.xlu0 %796
    %v798 = vlaneseq
    %v799 = vshrl.u32 %v798, 7
    %v800 = vadd.s32 %v799, 16
    %801 = vset.pattern.permute.xlu0 %v800
    %802 = vperm.xlu0 %801, %v785
    %v803 = vpop.permute.xlu0 %802
    %v804 = vlaneseq
    %v805 = vshrl.u32 %v804, 7
    %v806 = vadd.s32 %v805, 24
    %807 = vset.pattern.permute.xlu0 %v806
    %808 = vperm.xlu0 %807, %v785
    %v809 = vpop.permute.xlu0 %808
    %v810 = vlaneseq
    %v811 = vshrl.u32 %v810, 7
    %v812 = vadd.s32 %v811, 32
    %813 = vset.pattern.permute.xlu0 %v812
    %814 = vperm.xlu0 %813, %v785
    %v815 = vpop.permute.xlu0 %814
    %v816 = vlaneseq
    %v817 = vshrl.u32 %v816, 7
    %v818 = vadd.s32 %v817, 40
    %819 = vset.pattern.permute.xlu0 %v818
    %820 = vperm.xlu0 %819, %v785
    %v821 = vpop.permute.xlu0 %820
    %v822 = vlaneseq
    %v823 = vshrl.u32 %v822, 7
    %v824 = vadd.s32 %v823, 48
    %825 = vset.pattern.permute.xlu0 %v824
    %826 = vperm.xlu0 %825, %v785
    %v827 = vpop.permute.xlu0 %826
    %v828 = vlaneseq
    %v829 = vshrl.u32 %v828, 7
    %v830 = vadd.s32 %v829, 56
    %831 = vset.pattern.permute.xlu0 %v830
    %832 = vperm.xlu0 %831, %v785
    %v833 = vpop.permute.xlu0 %832
    %vm834 = vcmp.gt.f32.partialorder %v644, 0.5
    %vm835 = vcmp.gt.f32.partialorder %v650, 0.5
    %vm836 = vcmp.gt.f32.partialorder %v656, 0.5
    %vm837 = vcmp.gt.f32.partialorder %v662, 0.5
    %vm838 = vcmp.gt.f32.partialorder %v668, 0.5
    %vm839 = vcmp.gt.f32.partialorder %v674, 0.5
    %vm840 = vcmp.gt.f32.partialorder %v680, 0.5
    %vm841 = vcmp.gt.f32.partialorder %v686, 0.5
    %vm842 = vcmp.gt.f32.partialorder %v693, 0.5
    %vm843 = vcmp.gt.f32.partialorder %v699, 0.5
    %vm844 = vcmp.gt.f32.partialorder %v705, 0.5
    %vm845 = vcmp.gt.f32.partialorder %v711, 0.5
    %vm846 = vcmp.gt.f32.partialorder %v717, 0.5
    %vm847 = vcmp.gt.f32.partialorder %v723, 0.5
    %vm848 = vcmp.gt.f32.partialorder %v729, 0.5
    %vm849 = vcmp.gt.f32.partialorder %v735, 0.5
    %vm850 = vcmp.gt.f32.partialorder %v742, 0.5
    %vm851 = vcmp.gt.f32.partialorder %v748, 0.5
    %vm852 = vcmp.gt.f32.partialorder %v754, 0.5
    %vm853 = vcmp.gt.f32.partialorder %v760, 0.5
    %vm854 = vcmp.gt.f32.partialorder %v766, 0.5
    %vm855 = vcmp.gt.f32.partialorder %v772, 0.5
    %vm856 = vcmp.gt.f32.partialorder %v778, 0.5
    %vm857 = vcmp.gt.f32.partialorder %v784, 0.5
    %vm858 = vcmp.gt.f32.partialorder %v791, 0.5
    %vm859 = vcmp.gt.f32.partialorder %v797, 0.5
    %vm860 = vcmp.gt.f32.partialorder %v803, 0.5
    %vm861 = vcmp.gt.f32.partialorder %v809, 0.5
    %vm862 = vcmp.gt.f32.partialorder %v815, 0.5
    %vm863 = vcmp.gt.f32.partialorder %v821, 0.5
    %vm864 = vcmp.gt.f32.partialorder %v827, 0.5
    %vm865 = vcmp.gt.f32.partialorder %v833, 0.5
    %v866 = vsel %vm834, 1, 0
    %v867 = vsel %vm835, 1, 0
    %v868 = vsel %vm836, 1, 0
    %v869 = vsel %vm837, 1, 0
    %v870 = vsel %vm838, 1, 0
    %v871 = vsel %vm839, 1, 0
    %v872 = vsel %vm840, 1, 0
    %v873 = vsel %vm841, 1, 0
    %v874 = vsel %vm842, 1, 0
    %v875 = vsel %vm843, 1, 0
    %v876 = vsel %vm844, 1, 0
    %v877 = vsel %vm845, 1, 0
    %v878 = vsel %vm846, 1, 0
    %v879 = vsel %vm847, 1, 0
    %v880 = vsel %vm848, 1, 0
    %v881 = vsel %vm849, 1, 0
    %v882 = vsel %vm850, 1, 0
    %v883 = vsel %vm851, 1, 0
    %v884 = vsel %vm852, 1, 0
    %v885 = vsel %vm853, 1, 0
    %v886 = vsel %vm854, 1, 0
    %v887 = vsel %vm855, 1, 0
    %v888 = vsel %vm856, 1, 0
    %v889 = vsel %vm857, 1, 0
    %v890 = vsel %vm858, 1, 0
    %v891 = vsel %vm859, 1, 0
    %v892 = vsel %vm860, 1, 0
    %v893 = vsel %vm861, 1, 0
    %v894 = vsel %vm862, 1, 0
    %v895 = vsel %vm863, 1, 0
    %v896 = vsel %vm864, 1, 0
    %v897 = vsel %vm865, 1, 0
    %vm898 = vcmp.eq.s32.totalorder %v866, 1
    %vm899 = vcmp.eq.s32.totalorder %v867, 1
    %vm900 = vcmp.eq.s32.totalorder %v868, 1
    %vm901 = vcmp.eq.s32.totalorder %v869, 1
    %vm902 = vcmp.eq.s32.totalorder %v870, 1
    %vm903 = vcmp.eq.s32.totalorder %v871, 1
    %vm904 = vcmp.eq.s32.totalorder %v872, 1
    %vm905 = vcmp.eq.s32.totalorder %v873, 1
    %vm906 = vcmp.eq.s32.totalorder %v874, 1
    %vm907 = vcmp.eq.s32.totalorder %v875, 1
    %vm908 = vcmp.eq.s32.totalorder %v876, 1
    %vm909 = vcmp.eq.s32.totalorder %v877, 1
    %vm910 = vcmp.eq.s32.totalorder %v878, 1
    %vm911 = vcmp.eq.s32.totalorder %v879, 1
    %vm912 = vcmp.eq.s32.totalorder %v880, 1
    %vm913 = vcmp.eq.s32.totalorder %v881, 1
    %vm914 = vcmp.eq.s32.totalorder %v882, 1
    %vm915 = vcmp.eq.s32.totalorder %v883, 1
    %vm916 = vcmp.eq.s32.totalorder %v884, 1
    %vm917 = vcmp.eq.s32.totalorder %v885, 1
    %vm918 = vcmp.eq.s32.totalorder %v886, 1
    %vm919 = vcmp.eq.s32.totalorder %v887, 1
    %vm920 = vcmp.eq.s32.totalorder %v888, 1
    %vm921 = vcmp.eq.s32.totalorder %v889, 1
    %vm922 = vcmp.eq.s32.totalorder %v890, 1
    %vm923 = vcmp.eq.s32.totalorder %v891, 1
    %vm924 = vcmp.eq.s32.totalorder %v892, 1
    %vm925 = vcmp.eq.s32.totalorder %v893, 1
    %vm926 = vcmp.eq.s32.totalorder %v894, 1
    %vm927 = vcmp.eq.s32.totalorder %v895, 1
    %vm928 = vcmp.eq.s32.totalorder %v896, 1
    %vm929 = vcmp.eq.s32.totalorder %v897, 1
    %v930 = vsel %vm898, %v396, -1e+30
    %v931 = vsel %vm899, %v397, -1e+30
    %v932 = vsel %vm900, %v398, -1e+30
    %v933 = vsel %vm901, %v399, -1e+30
    %v934 = vsel %vm902, %v400, -1e+30
    %v935 = vsel %vm903, %v401, -1e+30
    %v936 = vsel %vm904, %v402, -1e+30
    %v937 = vsel %vm905, %v403, -1e+30
    %v938 = vsel %vm906, %v396, -1e+30
    %v939 = vsel %vm907, %v397, -1e+30
    %v940 = vsel %vm908, %v398, -1e+30
    %v941 = vsel %vm909, %v399, -1e+30
    %v942 = vsel %vm910, %v400, -1e+30
    %v943 = vsel %vm911, %v401, -1e+30
    %v944 = vsel %vm912, %v402, -1e+30
    %v945 = vsel %vm913, %v403, -1e+30
    %v946 = vsel %vm914, %v396, -1e+30
    %v947 = vsel %vm915, %v397, -1e+30
    %v948 = vsel %vm916, %v398, -1e+30
    %v949 = vsel %vm917, %v399, -1e+30
    %v950 = vsel %vm918, %v400, -1e+30
    %v951 = vsel %vm919, %v401, -1e+30
    %v952 = vsel %vm920, %v402, -1e+30
    %v953 = vsel %vm921, %v403, -1e+30
    %v954 = vsel %vm922, %v396, -1e+30
    %v955 = vsel %vm923, %v397, -1e+30
    %v956 = vsel %vm924, %v398, -1e+30
    %v957 = vsel %vm925, %v399, -1e+30
    %v958 = vsel %vm926, %v400, -1e+30
    %v959 = vsel %vm927, %v401, -1e+30
    %v960 = vsel %vm928, %v402, -1e+30
    %v961 = vsel %vm929, %v403, -1e+30
    %vm962 = vcmask 64512
    %v963 = vsel %vm962, %v930, -inf
    %v964 = vsel %vm962, %v931, -inf
    %v965 = vmax.f32 %v963, %v964
    %v966 = vsel %vm962, %v932, -inf
    %v967 = vmax.f32 %v965, %v966
    %v968 = vsel %vm962, %v933, -inf
    %v969 = vmax.f32 %v967, %v968
    %v970 = vsel %vm962, %v934, -inf
    %v971 = vmax.f32 %v969, %v970
    %v972 = vsel %vm962, %v935, -inf
    %v973 = vmax.f32 %v971, %v972
    %v974 = vsel %vm962, %v936, -inf
    %v975 = vmax.f32 %v973, %v974
    %v976 = vsel %vm962, %v937, -inf
    %v977 = vmax.f32 %v975, %v976
    %v978 = vrot.slane %v977, 4
    %v979 = vmax.f32 %v977, %v978
    %v980 = vrot.slane %v979, 2
    %v981 = vmax.f32 %v979, %v980
    %v982 = vrot.slane %v981, 1
    %v983 = vmax.f32 %v981, %v982
    %v984 = vsel %vm962, %v938, -inf
    %v985 = vsel %vm962, %v939, -inf
    %v986 = vmax.f32 %v984, %v985
    %v987 = vsel %vm962, %v940, -inf
    %v988 = vmax.f32 %v986, %v987
    %v989 = vsel %vm962, %v941, -inf
    %v990 = vmax.f32 %v988, %v989
    %v991 = vsel %vm962, %v942, -inf
    %v992 = vmax.f32 %v990, %v991
    %v993 = vsel %vm962, %v943, -inf
    %v994 = vmax.f32 %v992, %v993
    %v995 = vsel %vm962, %v944, -inf
    %v996 = vmax.f32 %v994, %v995
    %v997 = vsel %vm962, %v945, -inf
    %v998 = vmax.f32 %v996, %v997
    %v999 = vrot.slane %v998, 4
    %v1000 = vmax.f32 %v998, %v999
    %v1001 = vrot.slane %v1000, 2
    %v1002 = vmax.f32 %v1000, %v1001
    %v1003 = vrot.slane %v1002, 1
    %v1004 = vmax.f32 %v1002, %v1003
    %v1005 = vsel %vm962, %v946, -inf
    %v1006 = vsel %vm962, %v947, -inf
    %v1007 = vmax.f32 %v1005, %v1006
    %v1008 = vsel %vm962, %v948, -inf
    %v1009 = vmax.f32 %v1007, %v1008
    %v1010 = vsel %vm962, %v949, -inf
    %v1011 = vmax.f32 %v1009, %v1010
    %v1012 = vsel %vm962, %v950, -inf
    %v1013 = vmax.f32 %v1011, %v1012
    %v1014 = vsel %vm962, %v951, -inf
    %v1015 = vmax.f32 %v1013, %v1014
    %v1016 = vsel %vm962, %v952, -inf
    %v1017 = vmax.f32 %v1015, %v1016
    %v1018 = vsel %vm962, %v953, -inf
    %v1019 = vmax.f32 %v1017, %v1018
    %v1020 = vrot.slane %v1019, 4
    %v1021 = vmax.f32 %v1019, %v1020
    %v1022 = vrot.slane %v1021, 2
    %v1023 = vmax.f32 %v1021, %v1022
    %v1024 = vrot.slane %v1023, 1
    %v1025 = vmax.f32 %v1023, %v1024
    %v1026 = vsel %vm962, %v954, -inf
    %v1027 = vsel %vm962, %v955, -inf
    %v1028 = vmax.f32 %v1026, %v1027
    %v1029 = vsel %vm962, %v956, -inf
    %v1030 = vmax.f32 %v1028, %v1029
    %v1031 = vsel %vm962, %v957, -inf
    %v1032 = vmax.f32 %v1030, %v1031
    %v1033 = vsel %vm962, %v958, -inf
    %v1034 = vmax.f32 %v1032, %v1033
    %v1035 = vsel %vm962, %v959, -inf
    %v1036 = vmax.f32 %v1034, %v1035
    %v1037 = vsel %vm962, %v960, -inf
    %v1038 = vmax.f32 %v1036, %v1037
    %v1039 = vsel %vm962, %v961, -inf
    %v1040 = vmax.f32 %v1038, %v1039
    %v1041 = vrot.slane %v1040, 4
    %v1042 = vmax.f32 %v1040, %v1041
    %v1043 = vrot.slane %v1042, 2
    %v1044 = vmax.f32 %v1042, %v1043
    %v1045 = vrot.slane %v1044, 1
    %v1046 = vmax.f32 %v1044, %v1045
    %v1047 = vld [vmem:[#allocation2 + $0xa0] sm:$0x1]
    %v1048 = vperm.slane %v1047, 0
    %v1049 = vmul.f32 %v489, %v1048
    %v1050 = vld [vmem:[#allocation2 + $0xb0] sm:$0xff]
    %v1051 = vsel %vm962, %v530, 0
    %1053 = vmatpush.msra.mxu0 0.0
    %1054 = vmatpush.msra.mxu0 0.0
    %1055 = vmatpush.msra.mxu0 0.0
    %1056 = vmatpush.msra.mxu0 0.0
    %1057 = vmatpush.msra.mxu0 0.0
    %1058 = vmatpush.msra.mxu0 0.0
    %1059 = vmatpush.msra.mxu0 0.0
    %1060 = vmatpush.msra.mxu0 0.0
    %1061 = vmatpush.msra.mxu0 0.0
    %1062 = vmatpush.msra.mxu0 0.0
    %1063 = vmatpush.msra.mxu0 0.0
    %1064 = vmatpush.msra.mxu0 0.0
    %1065 = vmatpush.msra.mxu0 0.0
    %1066 = vmatpush.msra.mxu0 0.0
    %1067 = vmatpush.msra.mxu0 0.0
    %1068 = vmatpush.msra.mxu0 %v1050
    %1069 = vmatmul.f32.gmra.mxu0 %v1051
    %v1070 = vpop.f32.mrf.mxu0
    %v1071 = vadd.f32 0.0, %v1070
    %1072 = vdwg.mxu0
    %v1073 = vadd.f32 %v1049, %v1071
    %v1074 = vld [vmem:[#allocation2 + $0xc0] sm:$0xff]
    %v1076 = vsel %vm962, %v637, 0
    %1078 = vmatpush.msra.mxu0 0.0
    %1079 = vmatpush.msra.mxu0 0.0
    %1080 = vmatpush.msra.mxu0 0.0
    %1081 = vmatpush.msra.mxu0 0.0
    %1082 = vmatpush.msra.mxu0 0.0
    %1083 = vmatpush.msra.mxu0 0.0
    %1084 = vmatpush.msra.mxu0 0.0
    %1085 = vmatpush.msra.mxu0 0.0
    %1086 = vmatpush.msra.mxu0 0.0
    %1087 = vmatpush.msra.mxu0 0.0
    %1088 = vmatpush.msra.mxu0 0.0
    %1089 = vmatpush.msra.mxu0 0.0
    %1090 = vmatpush.msra.mxu0 0.0
    %1091 = vmatpush.msra.mxu0 0.0
    %1092 = vmatpush.msra.mxu0 0.0
    %1093 = vmatpush.msra.mxu0 %v1074
    %1094 = vmatmul.f32.gmra.mxu0 %v1076
    %v1095 = vpop.f32.mrf.mxu0
    %v1096 = vadd.f32 0.0, %v1095
    %1097 = vdwg.mxu0
    %v1098 = vadd.f32 %v1073, %v1096
    %v1099 = vld [vmem:[#allocation2 + $0xd0] sm:$0xff]
    %vm1104 = vcmask 1041409
    %v1105 = vsel %vm1104, %v1004, %v983
    %vm1106 = vcmask 1042434
    %v1107 = vsel %vm1106, %v1025, %v1105
    %vm1108 = vcmask 1043459
    %v1109 = vsel %vm1108, %v1046, %v1107
    %v1110 = vsel %vm962, %v1109, 0
    %1112 = vmatpush.msra.mxu0 0.0
    %1113 = vmatpush.msra.mxu0 0.0
    %1114 = vmatpush.msra.mxu0 0.0
    %1115 = vmatpush.msra.mxu0 0.0
    %1116 = vmatpush.msra.mxu0 0.0
    %1117 = vmatpush.msra.mxu0 0.0
    %1118 = vmatpush.msra.mxu0 0.0
    %1119 = vmatpush.msra.mxu0 0.0
    %1120 = vmatpush.msra.mxu0 0.0
    %1121 = vmatpush.msra.mxu0 0.0
    %1122 = vmatpush.msra.mxu0 0.0
    %1123 = vmatpush.msra.mxu0 0.0
    %1124 = vmatpush.msra.mxu0 0.0
    %1125 = vmatpush.msra.mxu0 0.0
    %1126 = vmatpush.msra.mxu0 0.0
    %1127 = vmatpush.msra.mxu0 %v1099
    %1128 = vmatmul.f32.gmra.mxu0 %v1110
    %v1129 = vpop.f32.mrf.mxu0
    %v1130 = vadd.f32 0.0, %v1129
    %1131 = vdwg.mxu0
    %v1132 = vadd.f32 %v1098, %v1130
    %v1133 = vld [vmem:[#allocation2 + $0xe0] sm:$0x1]
    %v1134 = vperm.slane %v1133, 0
    %v1135 = vadd.f32 %v1132, %v1134
    %vm1136 = vcmp.gt.f32.partialorder %v1135, 0.0
    %v1137 = vmul.f32 %v1135, 0.01
    %v1138 = vsel %vm1136, %v1135, %v1137
    %v1139 = vld [vmem:[#allocation2 + $0xf0] sm:$0xff]
    %v1140 = vld [vmem:[#allocation2 + $0xf8] sm:$0xff]
    %v1141 = vld [vmem:[#allocation2 + $0x100] sm:$0xff]
    %v1142 = vld [vmem:[#allocation2 + $0x108] sm:$0xff]
    %v1143 = vld [vmem:[#allocation2 + $0x110] sm:$0x1]
    %v1144 = vperm.slane %v1143, 0
    %v1146 = vsel %vm149, %v1138, 0
    %1148 = vmatpush.msra.mxu0 0.0
    %1149 = vmatpush.msra.mxu0 0.0
    %1150 = vmatpush.msra.mxu0 0.0
    %1151 = vmatpush.msra.mxu0 0.0
    %1152 = vmatpush.msra.mxu0 0.0
    %1153 = vmatpush.msra.mxu0 0.0
    %1154 = vmatpush.msra.mxu0 0.0
    %1155 = vmatpush.msra.mxu0 0.0
    %1156 = vmatpush.msra.mxu0 0.0
    %1157 = vmatpush.msra.mxu0 0.0
    %1158 = vmatpush.msra.mxu0 0.0
    %1159 = vmatpush.msra.mxu0 0.0
    %1160 = vmatpush.msra.mxu0 %v1142
    %1161 = vmatpush.msra.mxu0 %v1141
    %1162 = vmatpush.msra.mxu0 %v1140
    %1163 = vmatpush.msra.mxu0 %v1139
    %1164 = vmatmul.f32.gmra.mxu0 %v1146
    %v1165 = vpop.f32.mrf.mxu0
    %v1166 = vadd.f32 %v1144, %v1165
    %1167 = vdwg.mxu0
    %vm1168 = vcmp.gt.f32.partialorder %v1166, 0.0
    %v1169 = vmul.f32 %v1166, 0.01
    %v1170 = vsel %vm1168, %v1166, %v1169
    %v1172 = vsel %vm556, %v1170, 0
    %1174 = vmatpush.msra.mxu0 0.0
    %1175 = vmatpush.msra.mxu0 0.0
    %1176 = vmatpush.msra.mxu0 0.0
    %1177 = vmatpush.msra.mxu0 0.0
    %1178 = vmatpush.msra.mxu0 0.0
    %1179 = vmatpush.msra.mxu0 0.0
    %1180 = vmatpush.msra.mxu0 0.0
    %1181 = vmatpush.msra.mxu0 0.0
    %1182 = vmatpush.msra.mxu0 0.0
    %1183 = vmatpush.msra.mxu0 0.0
    %1184 = vmatpush.msra.mxu0 0.0
    %1185 = vmatpush.msra.mxu0 0.0
    %1186 = vmatpush.msra.mxu0 0.0
    %1187 = vmatpush.msra.mxu0 0.0
    %1188 = vmatpush.msra.mxu0 0.0
    %1189 = vmatpush.msra.mxu0 %v1172
    %1190 = vmatmul.f32.gmra.mxu0 %v533
    %v1191 = vpop.f32.mrf.mxu0
    %v1192 = vadd.f32 0.0, %v1191
    %1193 = vmatmul.f32.gmra.mxu0 %v536
    %v1194 = vpop.f32.mrf.mxu0
    %v1195 = vadd.f32 0.0, %v1194
    %1196 = vmatmul.f32.gmra.mxu0 %v539
    %v1197 = vpop.f32.mrf.mxu0
    %v1198 = vadd.f32 0.0, %v1197
    %1199 = vmatmul.f32.gmra.mxu0 %v542
    %v1200 = vpop.f32.mrf.mxu0
    %v1201 = vadd.f32 0.0, %v1200
    %1202 = vmatmul.f32.gmra.mxu0 %v545
    %v1203 = vpop.f32.mrf.mxu0
    %v1204 = vadd.f32 0.0, %v1203
    %1205 = vmatmul.f32.gmra.mxu0 %v548
    %v1206 = vpop.f32.mrf.mxu0
    %v1207 = vadd.f32 0.0, %v1206
    %1208 = vmatmul.f32.gmra.mxu0 %v551
    %v1209 = vpop.f32.mrf.mxu0
    %v1210 = vadd.f32 0.0, %v1209
    %1211 = vmatmul.f32.gmra.mxu0 %v554
    %v1212 = vpop.f32.mrf.mxu0
    %v1213 = vadd.f32 0.0, %v1212
    %1214 = vdwg.mxu0
    %v1215 = vld [vmem:[#allocation2 + $0x120] sm:$0xff]
    %v1216 = vld [vmem:[#allocation2 + $0x130] sm:$0xff]
    %v1218 = vsel %vm962, %v1192, 0
    %v1221 = vsel %vm962, %v1195, 0
    %v1224 = vsel %vm962, %v1198, 0
    %v1227 = vsel %vm962, %v1201, 0
    %v1230 = vsel %vm962, %v1204, 0
    %v1233 = vsel %vm962, %v1207, 0
    %v1236 = vsel %vm962, %v1210, 0
    %v1239 = vsel %vm962, %v1213, 0
    %1241 = vmatpush.msra.mxu0 0.0
    %1242 = vmatpush.msra.mxu0 0.0
    %1243 = vmatpush.msra.mxu0 0.0
    %1244 = vmatpush.msra.mxu0 0.0
    %1245 = vmatpush.msra.mxu0 0.0
    %1246 = vmatpush.msra.mxu0 0.0
    %1247 = vmatpush.msra.mxu0 0.0
    %1248 = vmatpush.msra.mxu0 0.0
    %1249 = vmatpush.msra.mxu0 0.0
    %1250 = vmatpush.msra.mxu0 0.0
    %1251 = vmatpush.msra.mxu0 0.0
    %1252 = vmatpush.msra.mxu0 0.0
    %1253 = vmatpush.msra.mxu0 0.0
    %1254 = vmatpush.msra.mxu0 0.0
    %1255 = vmatpush.msra.mxu0 0.0
    %1256 = vmatpush.msra.mxu0 %v1216
    %1257 = vmatmul.f32.gmra.mxu0 %v1218
    %v1258 = vpop.f32.mrf.mxu0
    %v1259 = vadd.f32 0.0, %v1258
    %1260 = vmatmul.f32.gmra.mxu0 %v1221
    %v1261 = vpop.f32.mrf.mxu0
    %v1262 = vadd.f32 0.0, %v1261
    %1263 = vmatmul.f32.gmra.mxu0 %v1224
    %v1264 = vpop.f32.mrf.mxu0
    %v1265 = vadd.f32 0.0, %v1264
    %1266 = vmatmul.f32.gmra.mxu0 %v1227
    %v1267 = vpop.f32.mrf.mxu0
    %v1268 = vadd.f32 0.0, %v1267
    %1269 = vmatmul.f32.gmra.mxu0 %v1230
    %v1270 = vpop.f32.mrf.mxu0
    %v1271 = vadd.f32 0.0, %v1270
    %1272 = vmatmul.f32.gmra.mxu0 %v1233
    %v1273 = vpop.f32.mrf.mxu0
    %v1274 = vadd.f32 0.0, %v1273
    %1275 = vmatmul.f32.gmra.mxu0 %v1236
    %v1276 = vpop.f32.mrf.mxu0
    %v1277 = vadd.f32 0.0, %v1276
    %1278 = vmatmul.f32.gmra.mxu0 %v1239
    %v1279 = vpop.f32.mrf.mxu0
    %v1280 = vadd.f32 0.0, %v1279
    %1281 = vdwg.mxu0
    %v1283 = vsel %vm962, %v396, 0
    %v1286 = vsel %vm962, %v397, 0
    %v1289 = vsel %vm962, %v398, 0
    %v1292 = vsel %vm962, %v399, 0
    %v1295 = vsel %vm962, %v400, 0
    %v1298 = vsel %vm962, %v401, 0
    %v1301 = vsel %vm962, %v402, 0
    %v1304 = vsel %vm962, %v403, 0
    %1306 = vmatpush.msra.mxu0 0.0
    %1307 = vmatpush.msra.mxu0 0.0
    %1308 = vmatpush.msra.mxu0 0.0
    %1309 = vmatpush.msra.mxu0 0.0
    %1310 = vmatpush.msra.mxu0 0.0
    %1311 = vmatpush.msra.mxu0 0.0
    %1312 = vmatpush.msra.mxu0 0.0
    %1313 = vmatpush.msra.mxu0 0.0
    %1314 = vmatpush.msra.mxu0 0.0
    %1315 = vmatpush.msra.mxu0 0.0
    %1316 = vmatpush.msra.mxu0 0.0
    %1317 = vmatpush.msra.mxu0 0.0
    %1318 = vmatpush.msra.mxu0 0.0
    %1319 = vmatpush.msra.mxu0 0.0
    %1320 = vmatpush.msra.mxu0 0.0
    %1321 = vmatpush.msra.mxu0 %v1215
    %1322 = vmatmul.f32.gmra.mxu0 %v1283
    %v1323 = vpop.f32.mrf.mxu0
    %v1324 = vadd.f32 %v1259, %v1323
    %1325 = vmatmul.f32.gmra.mxu0 %v1286
    %v1326 = vpop.f32.mrf.mxu0
    %v1327 = vadd.f32 %v1262, %v1326
    %1328 = vmatmul.f32.gmra.mxu0 %v1289
    %v1329 = vpop.f32.mrf.mxu0
    %v1330 = vadd.f32 %v1265, %v1329
    %1331 = vmatmul.f32.gmra.mxu0 %v1292
    %v1332 = vpop.f32.mrf.mxu0
    %v1333 = vadd.f32 %v1268, %v1332
    %1334 = vmatmul.f32.gmra.mxu0 %v1295
    %v1335 = vpop.f32.mrf.mxu0
    %v1336 = vadd.f32 %v1271, %v1335
    %1337 = vmatmul.f32.gmra.mxu0 %v1298
    %v1338 = vpop.f32.mrf.mxu0
    %v1339 = vadd.f32 %v1274, %v1338
    %1340 = vmatmul.f32.gmra.mxu0 %v1301
    %v1341 = vpop.f32.mrf.mxu0
    %v1342 = vadd.f32 %v1277, %v1341
    %1343 = vmatmul.f32.gmra.mxu0 %v1304
    %v1344 = vpop.f32.mrf.mxu0
    %v1345 = vadd.f32 %v1280, %v1344
    %1346 = vdwg.mxu0
    %v1347 = vld [vmem:[#allocation2 + $0x140] sm:$0x1]
    %v1348 = vperm.slane %v1347, 0
    %v1349 = vadd.f32 %v1324, %v1348
    %v1350 = vadd.f32 %v1327, %v1348
    %v1351 = vadd.f32 %v1330, %v1348
    %v1352 = vadd.f32 %v1333, %v1348
    %v1353 = vadd.f32 %v1336, %v1348
    %v1354 = vadd.f32 %v1339, %v1348
    %v1355 = vadd.f32 %v1342, %v1348
    %v1356 = vadd.f32 %v1345, %v1348
    %vm1357 = vcmp.gt.f32.partialorder %v1349, 0.0
    %vm1358 = vcmp.gt.f32.partialorder %v1350, 0.0
    %vm1359 = vcmp.gt.f32.partialorder %v1351, 0.0
    %vm1360 = vcmp.gt.f32.partialorder %v1352, 0.0
    %vm1361 = vcmp.gt.f32.partialorder %v1353, 0.0
    %vm1362 = vcmp.gt.f32.partialorder %v1354, 0.0
    %vm1363 = vcmp.gt.f32.partialorder %v1355, 0.0
    %vm1364 = vcmp.gt.f32.partialorder %v1356, 0.0
    %v1365 = vmul.f32 %v1349, 0.01
    %v1366 = vmul.f32 %v1350, 0.01
    %v1367 = vmul.f32 %v1351, 0.01
    %v1368 = vmul.f32 %v1352, 0.01
    %v1369 = vmul.f32 %v1353, 0.01
    %v1370 = vmul.f32 %v1354, 0.01
    %v1371 = vmul.f32 %v1355, 0.01
    %v1372 = vmul.f32 %v1356, 0.01
    %v1373 = vsel %vm1357, %v1349, %v1365
    %v1374 = vsel %vm1358, %v1350, %v1366
    %v1375 = vsel %vm1359, %v1351, %v1367
    %v1376 = vsel %vm1360, %v1352, %v1368
    %v1377 = vsel %vm1361, %v1353, %v1369
    %v1378 = vsel %vm1362, %v1354, %v1370
    %v1379 = vsel %vm1363, %v1355, %v1371
    %v1380 = vsel %vm1364, %v1356, %v1372
    %v1381 = vld [vmem:[#allocation2 + $0x150] sm:$0xff]
    %v1382 = vld [vmem:[#allocation2 + $0x158] sm:$0xff]
    %v1383 = vld [vmem:[#allocation2 + $0x160] sm:$0xff]
    %v1384 = vld [vmem:[#allocation2 + $0x168] sm:$0xff]
    %v1385 = vld [vmem:[#allocation2 + $0x170] sm:$0x1]
    %v1386 = vperm.slane %v1385, 0
    %v1388 = vsel %vm149, %v1373, 0
    %v1391 = vsel %vm149, %v1374, 0
    %v1394 = vsel %vm149, %v1375, 0
    %v1397 = vsel %vm149, %v1376, 0
    %v1400 = vsel %vm149, %v1377, 0
    %v1403 = vsel %vm149, %v1378, 0
    %v1406 = vsel %vm149, %v1379, 0
    %v1409 = vsel %vm149, %v1380, 0
    %1411 = vmatpush.msra.mxu0 0.0
    %1412 = vmatpush.msra.mxu0 0.0
    %1413 = vmatpush.msra.mxu0 0.0
    %1414 = vmatpush.msra.mxu0 0.0
    %1415 = vmatpush.msra.mxu0 0.0
    %1416 = vmatpush.msra.mxu0 0.0
    %1417 = vmatpush.msra.mxu0 0.0
    %1418 = vmatpush.msra.mxu0 0.0
    %1419 = vmatpush.msra.mxu0 0.0
    %1420 = vmatpush.msra.mxu0 0.0
    %1421 = vmatpush.msra.mxu0 0.0
    %1422 = vmatpush.msra.mxu0 0.0
    %1423 = vmatpush.msra.mxu0 %v1384
    %1424 = vmatpush.msra.mxu0 %v1383
    %1425 = vmatpush.msra.mxu0 %v1382
    %1426 = vmatpush.msra.mxu0 %v1381
    %1427 = vmatmul.f32.gmra.mxu0 %v1388
    %v1428 = vpop.f32.mrf.mxu0
    %v1429 = vadd.f32 %v1386, %v1428
    %1430 = vmatmul.f32.gmra.mxu0 %v1391
    %v1431 = vpop.f32.mrf.mxu0
    %v1432 = vadd.f32 %v1386, %v1431
    %1433 = vmatmul.f32.gmra.mxu0 %v1394
    %v1434 = vpop.f32.mrf.mxu0
    %v1435 = vadd.f32 %v1386, %v1434
    %1436 = vmatmul.f32.gmra.mxu0 %v1397
    %v1437 = vpop.f32.mrf.mxu0
    %v1438 = vadd.f32 %v1386, %v1437
    %1439 = vmatmul.f32.gmra.mxu0 %v1400
    %v1440 = vpop.f32.mrf.mxu0
    %v1441 = vadd.f32 %v1386, %v1440
    %1442 = vmatmul.f32.gmra.mxu0 %v1403
    %v1443 = vpop.f32.mrf.mxu0
    %v1444 = vadd.f32 %v1386, %v1443
    %1445 = vmatmul.f32.gmra.mxu0 %v1406
    %v1446 = vpop.f32.mrf.mxu0
    %v1447 = vadd.f32 %v1386, %v1446
    %1448 = vmatmul.f32.gmra.mxu0 %v1409
    %v1449 = vpop.f32.mrf.mxu0
    %v1450 = vadd.f32 %v1386, %v1449
    %1451 = vdwg.mxu0
    %v1452 = vadd.f32 %v1429, %v192
    %v1453 = vadd.f32 %v1432, %v195
    %v1454 = vadd.f32 %v1435, %v198
    %v1455 = vadd.f32 %v1438, %v201
    %v1456 = vadd.f32 %v1441, %v204
    %v1457 = vadd.f32 %v1444, %v207
    %v1458 = vadd.f32 %v1447, %v210
    %v1459 = vadd.f32 %v1450, %v213
    %1460 = vst.msk [vmem:[%s3] sm:$0xff] %vm219, %v1452
    %1461 = vst.msk [vmem:[%s3 + $0x8] sm:$0xff] %vm219, %v1453
    %1462 = vst.msk [vmem:[%s3 + $0x10] sm:$0xff] %vm219, %v1454
    %1463 = vst.msk [vmem:[%s3 + $0x18] sm:$0xff] %vm219, %v1455
    %1464 = vst.msk [vmem:[%s3 + $0x20] sm:$0xff] %vm219, %v1456
    %1465 = vst.msk [vmem:[%s3 + $0x28] sm:$0xff] %vm219, %v1457
    %1466 = vst.msk [vmem:[%s3 + $0x30] sm:$0xff] %vm219, %v1458
    %1467 = vst.msk [vmem:[%s3 + $0x38] sm:$0xff] %vm219, %v1459
    // Predicated region
    $region18: #{tpu_custom_call.1} parent=1 // pred_check
      _
    $region19: #{tpu_custom_call.1} parent=1 // pred_check_branch
      %1469 = sbr.rel (0) target = $region21
    $region20: #{tpu_custom_call.1} parent=1 // pred_region
      _
    $region21: #{tpu_custom_call.1} parent=1 // pred_fallthru
      _
    // Predicated region
    $region22: #{tpu_custom_call.1} parent=1 // pred_check
      _
    $region23: #{tpu_custom_call.1} parent=1 // pred_check_branch
      %1471 = sbr.rel (0) target = $region25
    $region24: #{tpu_custom_call.1} parent=1 // pred_region
      _
    $region25: #{tpu_custom_call.1} parent=1 // pred_fallthru
      _
    %1472 = vsyncpa [#allocation3], 1

</llo_original>
